<compile_context>
chip_gen: v7x
topology: tpu7x:2x2x1
jax: 0.10.0
libtpu: 0.0.40
codegen_flags: <defaults>
</compile_context>

<pallas_src>
import functools

import jax
import jax.numpy as jnp
from jax.experimental import pallas as pl
from jax.experimental.pallas import tpu as pltpu

BN_EPS = 1e-5


def _round_up(x, m):
    return (x + m - 1) // m * m


def _n_tile_cap():
    # v5e (and older) MXU is 128 wide -> widening N past 128 buys nothing.
    try:
        kind = jax.devices()[0].device_kind.lower()
        if any(v in kind for v in ("v2", "v3", "v4", "v5")):
            return 128
    except Exception:
        pass
    return 256  # v6e / v7x: 2x256^2 MXU


# --------------------------------------------------------------------------
# Fused matmul kernel:  out = act((A @ B) * scale + bias [+ residual])
# --------------------------------------------------------------------------
def _fused_matmul_kernel(a_ref, b_ref, scale_ref, bias_ref, *rest,
                         apply_relu, has_residual):
    if has_residual:
        res_ref, o_ref, acc_ref = rest
    else:
        o_ref, acc_ref = rest
        res_ref = None

    k = pl.program_id(2)

    @pl.when(k == 0)
    def _():
        acc_ref[...] = jnp.zeros_like(acc_ref)

    # bf16 x bf16 on the MXU, f32 accumulation.
    acc_ref[...] += jnp.dot(a_ref[...], b_ref[...],
                            preferred_element_type=jnp.float32)

    @pl.when(k == pl.num_programs(2) - 1)
    def _():
        out = acc_ref[...] * scale_ref[0:1, :] + bias_ref[0:1, :]
        if has_residual:
            out = out + res_ref[...].astype(jnp.float32)
        if apply_relu:
            out = jnp.maximum(out, 0.0)
        o_ref[...] = out.astype(o_ref.dtype)


def fused_matmul(a, b, scale, bias, *, relu, residual=None,
                 out_dtype=jnp.float32):
    """act((a @ b) * scale + bias [+ residual]); scale/bias are per-column."""
    M, K = a.shape
    Kb, N = b.shape
    assert K == Kb

    n_cap = _n_tile_cap()

    # M tiling (256 max; sublane multiple of 16 for bf16 packing).
    if M > 256:
        tm = 256
        Mp = _round_up(M, tm)
    else:
        tm = _round_up(max(M, 16), 16)
        Mp = tm

    # N tiling: lane-dense output (>=128), capped per MXU generation.
    if N > n_cap:
        tn = n_cap
        Np = _round_up(N, tn)
    else:
        tn = _round_up(max(N, 128), 128)
        Np = tn

    # K tiling: no zero-padding to 128 -- pad only to the bf16 sublane multiple
    # and use a single full-K step when it fits; deep chunks otherwise.
    Kp = _round_up(K, 16)
    if Kp <= 2048:
        tk = Kp
    else:
        tk = 512
        Kp = _round_up(K, tk)

    a_p = jnp.pad(a.astype(jnp.bfloat16), ((0, Mp - M), (0, Kp - K)))
    b_p = jnp.pad(b.astype(jnp.bfloat16), ((0, Kp - K), (0, Np - N)))
    scale_p = jnp.broadcast_to(
        jnp.pad(scale.astype(jnp.float32).reshape(1, -1),
                ((0, 0), (0, Np - N))), (8, Np))
    bias_p = jnp.broadcast_to(
        jnp.pad(bias.astype(jnp.float32).reshape(1, -1),
                ((0, 0), (0, Np - N))), (8, Np))

    has_res = residual is not None
    inputs = [a_p, b_p, scale_p, bias_p]
    in_specs = [
        pl.BlockSpec((tm, tk), lambda i, j, k: (i, k)),
        pl.BlockSpec((tk, tn), lambda i, j, k: (k, j)),
        pl.BlockSpec((8, tn), lambda i, j, k: (0, j)),
        pl.BlockSpec((8, tn), lambda i, j, k: (0, j)),
    ]
    if has_res:
        r_p = jnp.pad(residual.astype(jnp.float32),
                      ((0, Mp - M), (0, Np - N)))
        inputs.append(r_p)
        in_specs.append(pl.BlockSpec((tm, tn), lambda i, j, k: (i, j)))

    grid = (Mp // tm, Np // tn, Kp // tk)

    out = pl.pallas_call(
        functools.partial(_fused_matmul_kernel,
                          apply_relu=relu, has_residual=has_res),
        out_shape=jax.ShapeDtypeStruct((Mp, Np), out_dtype),
        grid_spec=pltpu.PrefetchScalarGridSpec(
            num_scalar_prefetch=0,
            grid=grid,
            in_specs=in_specs,
            out_specs=pl.BlockSpec((tm, tn), lambda i, j, k: (i, j)),
            scratch_shapes=[pltpu.VMEM((tm, tn), jnp.float32)],
        ),
        compiler_params=pltpu.CompilerParams(
            dimension_semantics=("parallel", "parallel", "arbitrary"),
            vmem_limit_bytes=32 * 1024 * 1024),
    )(*inputs)
    return out[:M, :N]


# --------------------------------------------------------------------------
# Conv + BN (+ReLU / +residual) building blocks
# --------------------------------------------------------------------------
def _fold_bn(bn, conv_b, cout):
    gamma, beta, mean, var = bn
    scale = gamma / jnp.sqrt(var + BN_EPS)
    b = conv_b if conv_b is not None else jnp.zeros((cout,), jnp.float32)
    bias = beta + (b - mean) * scale
    return scale, bias


def im2col(x, kh, kw, stride, pad):
    """x: NHWC -> patches [N*Ho*Wo, kh*kw*C] (x should already be bf16)."""
    N, H, W, C = x.shape
    Ho = (H + 2 * pad - kh) // stride + 1
    Wo = (W + 2 * pad - kw) // stride + 1
    xp = jnp.pad(x, ((0, 0), (pad, pad), (pad, pad), (0, 0)))
    cols = [xp[:, i:i + stride * Ho:stride, j:j + stride * Wo:stride, :]
            for i in range(kh) for j in range(kw)]
    patches = jnp.concatenate(cols, axis=-1)          # [N, Ho, Wo, kh*kw*C]
    return patches.reshape(N * Ho * Wo, kh * kw * C), (N, Ho, Wo)


def conv1x1_bn_act(x, w, conv_b, bn, *, stride, relu, out_dtype,
                   residual=None):
    """1x1 conv + BN (+ReLU, +residual) with no im2col materialization."""
    Cout, Cin = w.shape[0], w.shape[1]
    if stride > 1:
        x = x[:, ::stride, ::stride, :]
    N, Ho, Wo, _ = x.shape
    a = x.reshape(N * Ho * Wo, Cin)
    w2 = w.reshape(Cout, Cin).T
    scale, bias = _fold_bn(bn, conv_b, Cout)
    y = fused_matmul(a, w2, scale, bias, relu=relu, residual=residual,
                     out_dtype=out_dtype)
    return y.reshape(N, Ho, Wo, Cout)


def conv3x3_bn_act(x, w, conv_b, bn, *, stride, relu, out_dtype):
    """3x3 conv (pad=1) + BN (+ReLU) via bf16 im2col + fused matmul."""
    Cout, Cin, kh, kw = w.shape
    patches, (N, Ho, Wo) = im2col(x.astype(jnp.bfloat16), kh, kw, stride, 1)
    w2 = jnp.transpose(w, (2, 3, 1, 0)).reshape(kh * kw * Cin, Cout)
    scale, bias = _fold_bn(bn, conv_b, Cout)
    y = fused_matmul(patches, w2, scale, bias, relu=relu, out_dtype=out_dtype)
    return y.reshape(N, Ho, Wo, Cout)


# --------------------------------------------------------------------------
# Block forward (mirrors the PyTorch Block.forward)
# --------------------------------------------------------------------------
def block_forward(params, x_nchw, *, num_layers, stride):
    x = jnp.transpose(x_nchw, (0, 2, 3, 1)).astype(jnp.float32)  # NCHW->NHWC

    out = x
    if num_layers > 34:                                # bottleneck: conv1-bn1-relu
        out = conv1x1_bn_act(out, params["conv1_w"], params["conv1_b"],
                             params["bn1"], stride=1, relu=True,
                             out_dtype=jnp.bfloat16)

    out = conv3x3_bn_act(out, params["conv2_w"], params["conv2_b"],
                         params["bn2"], stride=stride, relu=True,
                         out_dtype=jnp.bfloat16)       # conv2-bn2-relu

    if "ds_w" in params:                               # identity_downsample
        identity = conv1x1_bn_act(x, params["ds_w"], params["ds_b"],
                                  params["ds_bn"], stride=stride, relu=False,
                                  out_dtype=jnp.float32)
    else:
        identity = x

    N, Ho, Wo, _ = out.shape
    res = identity.reshape(N * Ho * Wo, identity.shape[-1])

    # conv3-bn3 + residual add + ReLU fused into one matmul epilogue.
    y = conv1x1_bn_act(out, params["conv3_w"], params["conv3_b"],
                       params["bn3"], stride=1, relu=True,
                       out_dtype=jnp.float32, residual=res)
    return jnp.transpose(y, (0, 3, 1, 2))              # NHWC -> NCHW


# --------------------------------------------------------------------------
# Deterministic parameter init
# --------------------------------------------------------------------------
def _bn_init(key, c):
    k1, k2, k3, k4 = jax.random.split(key, 4)
    gamma = 1.0 + 0.1 * jax.random.normal(k1, (c,), jnp.float32)
    beta = 0.1 * jax.random.normal(k2, (c,), jnp.float32)
    mean = 0.1 * jax.random.normal(k3, (c,), jnp.float32)
    var = 1.0 + 0.1 * jax.random.uniform(k4, (c,), jnp.float32)
    return (gamma, beta, mean, var)


def init_block_params(key, *, num_layers, in_channels, out_channels,
                      has_downsample):
    expansion = 4 if num_layers > 34 else 1
    keys = iter(jax.random.split(key, 32))

    def nk():
        return next(keys)

    def conv_w(cout, cin, kh, kw):
        fan_in = cin * kh * kw
        return jax.random.normal(nk(), (cout, cin, kh, kw),
                                 jnp.float32) * (2.0 / fan_in) ** 0.5

    def conv_b(cout):
        return 0.05 * jax.random.normal(nk(), (cout,), jnp.float32)

    p = {}
    if num_layers > 34:
        p["conv1_w"] = conv_w(out_channels, in_channels, 1, 1)
        p["conv1_b"] = conv_b(out_channels)
        p["bn1"] = _bn_init(nk(), out_channels)
        c2_in = out_channels
    else:
        c2_in = in_channels
    p["conv2_w"] = conv_w(out_channels, c2_in, 3, 3)
    p["conv2_b"] = conv_b(out_channels)
    p["bn2"] = _bn_init(nk(), out_channels)
    cexp = out_channels * expansion
    p["conv3_w"] = conv_w(cexp, out_channels, 1, 1)
    p["conv3_b"] = conv_b(cexp)
    p["bn3"] = _bn_init(nk(), cexp)
    if has_downsample:
        p["ds_w"] = conv_w(cexp, in_channels, 1, 1)
        p["ds_b"] = conv_b(cexp)
        p["ds_bn"] = _bn_init(nk(), cexp)
    return p


# --------------------------------------------------------------------------
# Pure-JAX reference (f32) for validation
# --------------------------------------------------------------------------
def _conv_ref(x, w, b, stride, pad):
    y = jax.lax.conv_general_dilated(
        x, w, window_strides=(stride, stride),
        padding=((pad, pad), (pad, pad)),
        dimension_numbers=("NCHW", "OIHW", "NCHW"))
    return y + b.reshape(1, -1, 1, 1)


def _bn_ref(x, bn):
    gamma, beta, mean, var = bn
    inv = gamma / jnp.sqrt(var + BN_EPS)
    return ((x - mean.reshape(1, -1, 1, 1)) * inv.reshape(1, -1, 1, 1)
            + beta.reshape(1, -1, 1, 1))


def block_forward_ref(params, x, *, num_layers, stride):
    identity = x
    out = x
    if num_layers > 34:
        out = jnp.maximum(_bn_ref(_conv_ref(out, params["conv1_w"],
                                            params["conv1_b"], 1, 0),
                                  params["bn1"]), 0.0)
    out = jnp.maximum(_bn_ref(_conv_ref(out, params["conv2_w"],
                                        params["conv2_b"], stride, 1),
                              params["bn2"]), 0.0)
    out = _bn_ref(_conv_ref(out, params["conv3_w"], params["conv3_b"], 1, 0),
                  params["bn3"])
    if "ds_w" in params:
        identity = _bn_ref(_conv_ref(x, params["ds_w"], params["ds_b"],
                                     stride, 0), params["ds_bn"])
    return jnp.maximum(out + identity, 0.0)


def _rel_err(y, y_ref):
    scale = jnp.maximum(jnp.max(jnp.abs(y_ref)), 1e-3)
    return float(jnp.max(jnp.abs(y - y_ref)) / scale)


if __name__ == "__main__":
    key = jax.random.PRNGKey(0)
    kx, k1, k2, k3 = jax.random.split(key, 4)
    x = jax.random.normal(kx, (2, 8, 16, 16), jnp.float32)   # NCHW

    # 1) Basic block (ResNet-18 style), stride=1, identity passthrough.
    p1 = init_block_params(k1, num_layers=18, in_channels=8, out_channels=8,
                           has_downsample=False)
    f1 = jax.jit(functools.partial(block_forward, num_layers=18, stride=1))
    y1 = f1(p1, x)

    # 2) Basic block with 1x1-conv+BN downsample, stride=2.
    p2 = init_block_params(k2, num_layers=18, in_channels=8, out_channels=16,
                           has_downsample=True)
    f2 = jax.jit(functools.partial(block_forward, num_layers=18, stride=2))
    y2 = f2(p2, x)

    # 3) Bottleneck block (num_layers > 34, expansion=4), stride=2, downsample.
    p3 = init_block_params(k3, num_layers=50, in_channels=8, out_channels=8,
                           has_downsample=True)
    f3 = jax.jit(functools.partial(block_forward, num_layers=50, stride=2))
    y3 = f3(p3, x)

    jax.block_until_ready((y1, y2, y3))

    assert y1.shape == (2, 8, 16, 16) and y1.dtype == jnp.float32
    assert y2.shape == (2, 16, 8, 8) and y2.dtype == jnp.float32
    assert y3.shape == (2, 32, 8, 8) and y3.dtype == jnp.float32

    r1 = block_forward_ref(p1, x, num_layers=18, stride=1)
    r2 = block_forward_ref(p2, x, num_layers=18, stride=2)
    r3 = block_forward_ref(p3, x, num_layers=50, stride=2)
    # bf16 matmul inputs / bf16 inter-layer activations -> generous tolerance.
    assert _rel_err(y1, r1) < 0.08
    assert _rel_err(y2, r2) < 0.08
    assert _rel_err(y3, r3) < 0.08

    print("KERNEL_OK")
</pallas_src>

<mosaic_0001>
module attributes {stable_mosaic.version = 11 : i64} {
  func.func @_fused_matmul_kernel(%arg0: i32, %arg1: i32, %arg2: i32, %arg3: memref<256x80xbf16, #tpu.memory_space<vmem>>, %arg4: memref<80x128xbf16, #tpu.memory_space<vmem>>, %arg5: memref<8x128xf32, #tpu.memory_space<vmem>>, %arg6: memref<8x128xf32, #tpu.memory_space<vmem>>, %arg7: memref<256x128xbf16, #tpu.memory_space<vmem>>, %arg8: memref<256x128xf32, #tpu.memory_space<vmem>>) attributes {dimension_semantics = [#tpu.dimension_semantics<parallel>, #tpu.dimension_semantics<parallel>, #tpu.dimension_semantics<arbitrary>], iteration_bounds = array<i64: 2, 1, 1>, scalar_prefetch = 0 : i64, scratch_operands = 1 : i64, tpu.core_type = #tpu.core_type<tc>, window_params = [{transform_indices = @transform_0, window_bounds = array<i64: 256, 80>}, {transform_indices = @transform_1, window_bounds = array<i64: 80, 128>}, {transform_indices = @transform_2, window_bounds = array<i64: 8, 128>}, {transform_indices = @transform_3, window_bounds = array<i64: 8, 128>}, {transform_indices = @transform_4, window_bounds = array<i64: 256, 128>}]} {
    %c0_i32 = arith.constant 0 : i32
    %0 = arith.cmpi eq, %arg2, %c0_i32 : i32
    %1 = arith.extui %0 : i1 to i32
    %c0_i32_0 = arith.constant 0 : i32
    %2 = arith.cmpi ne, %1, %c0_i32_0 : i32
    scf.if %2 {
      %cst_10 = arith.constant 0.000000e+00 : f32
      %12 = vector.broadcast %cst_10 : f32 to vector<256x128xf32>
      %c0_11 = arith.constant 0 : index
      %c0_12 = arith.constant 0 : index
      %13 = vector.load %arg8[%c0_11, %c0_12] : memref<256x128xf32, #tpu.memory_space<vmem>>, vector<256x128xf32>
      tpu.vector_store %arg8[%c0_11, %c0_12], %12 {strides = array<i32>} : memref<256x128xf32, #tpu.memory_space<vmem>>, vector<256x128xf32>,
    } else {
    }
    %c0 = arith.constant 0 : index
    %c0_1 = arith.constant 0 : index
    %3 = vector.load %arg8[%c0, %c0_1] : memref<256x128xf32, #tpu.memory_space<vmem>>, vector<256x128xf32>
    %c0_2 = arith.constant 0 : index
    %c0_3 = arith.constant 0 : index
    %4 = vector.load %arg3[%c0_2, %c0_3] : memref<256x80xbf16, #tpu.memory_space<vmem>>, vector<256x80xbf16>
    %c0_4 = arith.constant 0 : index
    %c0_5 = arith.constant 0 : index
    %5 = vector.load %arg4[%c0_4, %c0_5] : memref<80x128xbf16, #tpu.memory_space<vmem>>, vector<80x128xbf16>
    %cst = arith.constant dense<0.000000e+00> : vector<256x128xf32>
    %6 = tpu.matmul %4, %5, %cst {dimension_numbers = #tpu.dot_dimension_numbers<[1], [0], [0], [1], [0, 0, 1, 1], [], []>} : vector<256x80xbf16>, vector<80x128xbf16>, vector<256x128xf32> -> vector<256x128xf32>
    %7 = arith.addf %3, %6 : vector<256x128xf32>
    %c0_6 = arith.constant 0 : index
    %c0_7 = arith.constant 0 : index
    %8 = vector.load %arg8[%c0_6, %c0_7] : memref<256x128xf32, #tpu.memory_space<vmem>>, vector<256x128xf32>
    tpu.vector_store %arg8[%c0_6, %c0_7], %7 {strides = array<i32>} : memref<256x128xf32, #tpu.memory_space<vmem>>, vector<256x128xf32>,
    %c0_i32_8 = arith.constant 0 : i32
    %9 = arith.cmpi eq, %arg2, %c0_i32_8 : i32
    %10 = arith.extui %9 : i1 to i32
    %c0_i32_9 = arith.constant 0 : i32
    %11 = arith.cmpi ne, %10, %c0_i32_9 : i32
    scf.if %11 {
      %c0_10 = arith.constant 0 : index
      %c0_11 = arith.constant 0 : index
      %12 = vector.load %arg8[%c0_10, %c0_11] : memref<256x128xf32, #tpu.memory_space<vmem>>, vector<256x128xf32>
      %c0_12 = arith.constant 0 : index
      %c0_13 = arith.constant 0 : index
      %13 = vector.load %arg5[%c0_12, %c0_13] : memref<8x128xf32, #tpu.memory_space<vmem>>, vector<1x128xf32>
      %14 = vector.broadcast %13 : vector<1x128xf32> to vector<256x128xf32>
      %15 = arith.mulf %12, %14 : vector<256x128xf32>
      %c0_14 = arith.constant 0 : index
      %c0_15 = arith.constant 0 : index
      %16 = vector.load %arg6[%c0_14, %c0_15] : memref<8x128xf32, #tpu.memory_space<vmem>>, vector<1x128xf32>
      %17 = vector.broadcast %16 : vector<1x128xf32> to vector<256x128xf32>
      %18 = arith.addf %15, %17 : vector<256x128xf32>
      %cst_16 = arith.constant 0.000000e+00 : f32
      %19 = vector.broadcast %cst_16 : f32 to vector<256x128xf32>
      %20 = arith.maximumf %18, %19 : vector<256x128xf32>
      %21 = arith.truncf %20 : vector<256x128xf32> to vector<256x128xbf16>
      %c0_17 = arith.constant 0 : index
      %c0_18 = arith.constant 0 : index
      %22 = vector.load %arg7[%c0_17, %c0_18] : memref<256x128xbf16, #tpu.memory_space<vmem>>, vector<256x128xbf16>
      tpu.vector_store %arg7[%c0_17, %c0_18], %21 {strides = array<i32>} : memref<256x128xbf16, #tpu.memory_space<vmem>>, vector<256x128xbf16>,
    } else {
    }
    return
  }
  func.func @transform_0(%arg0: i32, %arg1: i32, %arg2: i32) -> (i32, i32) {
    %c0_i32 = arith.constant 0 : i32
    return %arg0, %arg2 : i32, i32
  }
  func.func @transform_1(%arg0: i32, %arg1: i32, %arg2: i32) -> (i32, i32) {
    %c0_i32 = arith.constant 0 : i32
    return %arg2, %arg1 : i32, i32
  }
  func.func @transform_2(%arg0: i32, %arg1: i32, %arg2: i32) -> (i32, i32) {
    %c0_i32 = arith.constant 0 : i32
    %c0_i32_0 = arith.constant 0 : i32
    return %c0_i32, %arg1 : i32, i32
  }
  func.func @transform_3(%arg0: i32, %arg1: i32, %arg2: i32) -> (i32, i32) {
    %c0_i32 = arith.constant 0 : i32
    %c0_i32_0 = arith.constant 0 : i32
    return %c0_i32, %arg1 : i32, i32
  }
  func.func @transform_4(%arg0: i32, %arg1: i32, %arg2: i32) -> (i32, i32) {
    %c0_i32 = arith.constant 0 : i32
    return %arg0, %arg1 : i32, i32
  }
}

module attributes {stable_mosaic.version = 11 : i64} {
  func.func @_fused_matmul_kernel(%arg0: i32, %arg1: i32, %arg2: i32, %arg3: memref<256x16xbf16, #tpu.memory_space<vmem>>, %arg4: memref<16x128xbf16, #tpu.memory_space<vmem>>, %arg5: memref<8x128xf32, #tpu.memory_space<vmem>>, %arg6: memref<8x128xf32, #tpu.memory_space<vmem>>, %arg7: memref<256x128xf32, #tpu.memory_space<vmem>>, %arg8: memref<256x128xf32, #tpu.memory_space<vmem>>, %arg9: memref<256x128xf32, #tpu.memory_space<vmem>>) attributes {dimension_semantics = [#tpu.dimension_semantics<parallel>, #tpu.dimension_semantics<parallel>, #tpu.dimension_semantics<arbitrary>], iteration_bounds = array<i64: 2, 1, 1>, scalar_prefetch = 0 : i64, scratch_operands = 1 : i64, tpu.core_type = #tpu.core_type<tc>, window_params = [{transform_indices = @transform_0, window_bounds = array<i64: 256, 16>}, {transform_indices = @transform_1, window_bounds = array<i64: 16, 128>}, {transform_indices = @transform_2, window_bounds = array<i64: 8, 128>}, {transform_indices = @transform_3, window_bounds = array<i64: 8, 128>}, {transform_indices = @transform_4, window_bounds = array<i64: 256, 128>}, {transform_indices = @transform_5, window_bounds = array<i64: 256, 128>}]} {
    %c0_i32 = arith.constant 0 : i32
    %0 = arith.cmpi eq, %arg2, %c0_i32 : i32
    %1 = arith.extui %0 : i1 to i32
    %c0_i32_0 = arith.constant 0 : i32
    %2 = arith.cmpi ne, %1, %c0_i32_0 : i32
    scf.if %2 {
      %cst_10 = arith.constant 0.000000e+00 : f32
      %12 = vector.broadcast %cst_10 : f32 to vector<256x128xf32>
      %c0_11 = arith.constant 0 : index
      %c0_12 = arith.constant 0 : index
      %13 = vector.load %arg9[%c0_11, %c0_12] : memref<256x128xf32, #tpu.memory_space<vmem>>, vector<256x128xf32>
      tpu.vector_store %arg9[%c0_11, %c0_12], %12 {strides = array<i32>} : memref<256x128xf32, #tpu.memory_space<vmem>>, vector<256x128xf32>,
    } else {
    }
    %c0 = arith.constant 0 : index
    %c0_1 = arith.constant 0 : index
    %3 = vector.load %arg9[%c0, %c0_1] : memref<256x128xf32, #tpu.memory_space<vmem>>, vector<256x128xf32>
    %c0_2 = arith.constant 0 : index
    %c0_3 = arith.constant 0 : index
    %4 = vector.load %arg3[%c0_2, %c0_3] : memref<256x16xbf16, #tpu.memory_space<vmem>>, vector<256x16xbf16>
    %c0_4 = arith.constant 0 : index
    %c0_5 = arith.constant 0 : index
    %5 = vector.load %arg4[%c0_4, %c0_5] : memref<16x128xbf16, #tpu.memory_space<vmem>>, vector<16x128xbf16>
    %cst = arith.constant dense<0.000000e+00> : vector<256x128xf32>
    %6 = tpu.matmul %4, %5, %cst {dimension_numbers = #tpu.dot_dimension_numbers<[1], [0], [0], [1], [0, 0, 1, 1], [], []>} : vector<256x16xbf16>, vector<16x128xbf16>, vector<256x128xf32> -> vector<256x128xf32>
    %7 = arith.addf %3, %6 : vector<256x128xf32>
    %c0_6 = arith.constant 0 : index
    %c0_7 = arith.constant 0 : index
    %8 = vector.load %arg9[%c0_6, %c0_7] : memref<256x128xf32, #tpu.memory_space<vmem>>, vector<256x128xf32>
    tpu.vector_store %arg9[%c0_6, %c0_7], %7 {strides = array<i32>} : memref<256x128xf32, #tpu.memory_space<vmem>>, vector<256x128xf32>,
    %c0_i32_8 = arith.constant 0 : i32
    %9 = arith.cmpi eq, %arg2, %c0_i32_8 : i32
    %10 = arith.extui %9 : i1 to i32
    %c0_i32_9 = arith.constant 0 : i32
    %11 = arith.cmpi ne, %10, %c0_i32_9 : i32
    scf.if %11 {
      %c0_10 = arith.constant 0 : index
      %c0_11 = arith.constant 0 : index
      %12 = vector.load %arg9[%c0_10, %c0_11] : memref<256x128xf32, #tpu.memory_space<vmem>>, vector<256x128xf32>
      %c0_12 = arith.constant 0 : index
      %c0_13 = arith.constant 0 : index
      %13 = vector.load %arg5[%c0_12, %c0_13] : memref<8x128xf32, #tpu.memory_space<vmem>>, vector<1x128xf32>
      %14 = vector.broadcast %13 : vector<1x128xf32> to vector<256x128xf32>
      %15 = arith.mulf %12, %14 : vector<256x128xf32>
      %c0_14 = arith.constant 0 : index
      %c0_15 = arith.constant 0 : index
      %16 = vector.load %arg6[%c0_14, %c0_15] : memref<8x128xf32, #tpu.memory_space<vmem>>, vector<1x128xf32>
      %17 = vector.broadcast %16 : vector<1x128xf32> to vector<256x128xf32>
      %18 = arith.addf %15, %17 : vector<256x128xf32>
      %c0_16 = arith.constant 0 : index
      %c0_17 = arith.constant 0 : index
      %19 = vector.load %arg7[%c0_16, %c0_17] : memref<256x128xf32, #tpu.memory_space<vmem>>, vector<256x128xf32>
      %20 = arith.addf %18, %19 : vector<256x128xf32>
      %cst_18 = arith.constant 0.000000e+00 : f32
      %21 = vector.broadcast %cst_18 : f32 to vector<256x128xf32>
      %22 = arith.maximumf %20, %21 : vector<256x128xf32>
      %c0_19 = arith.constant 0 : index
      %c0_20 = arith.constant 0 : index
      %23 = vector.load %arg8[%c0_19, %c0_20] : memref<256x128xf32, #tpu.memory_space<vmem>>, vector<256x128xf32>
      tpu.vector_store %arg8[%c0_19, %c0_20], %22 {strides = array<i32>} : memref<256x128xf32, #tpu.memory_space<vmem>>, vector<256x128xf32>,
    } else {
    }
    return
  }
  func.func @transform_0(%arg0: i32, %arg1: i32, %arg2: i32) -> (i32, i32) {
    %c0_i32 = arith.constant 0 : i32
    return %arg0, %arg2 : i32, i32
  }
  func.func @transform_1(%arg0: i32, %arg1: i32, %arg2: i32) -> (i32, i32) {
    %c0_i32 = arith.constant 0 : i32
    return %arg2, %arg1 : i32, i32
  }
  func.func @transform_2(%arg0: i32, %arg1: i32, %arg2: i32) -> (i32, i32) {
    %c0_i32 = arith.constant 0 : i32
    %c0_i32_0 = arith.constant 0 : i32
    return %c0_i32, %arg1 : i32, i32
  }
  func.func @transform_3(%arg0: i32, %arg1: i32, %arg2: i32) -> (i32, i32) {
    %c0_i32 = arith.constant 0 : i32
    %c0_i32_0 = arith.constant 0 : i32
    return %c0_i32, %arg1 : i32, i32
  }
  func.func @transform_4(%arg0: i32, %arg1: i32, %arg2: i32) -> (i32, i32) {
    %c0_i32 = arith.constant 0 : i32
    return %arg0, %arg1 : i32, i32
  }
  func.func @transform_5(%arg0: i32, %arg1: i32, %arg2: i32) -> (i32, i32) {
    %c0_i32 = arith.constant 0 : i32
    return %arg0, %arg1 : i32, i32
  }
}

</mosaic_0001>

<llo_original>
// kernel: block_forward.2
$region0: #{block_forward.2}
  #allocation0 [shape = 'u32[]', space=smem, size = 0x4, offset = 0x4, fixed_abs, tag = 'smem constant byte address 0x4 - core index']
  #allocation1 [shape = 'u32[144,128]{1,0:T(1,128)}', space=vmem, size = 0x12000, scoped, tag = 'internal scratch']
  #allocation2 [shape = 'f32[256,128]{1,0:T(8,128)}', space=vmem, size = 0x20000, scoped, tag = 'scratch operand']
  %s0 = inlined_call_operand.vmem [shape: bf16[512,80], index: 0, kind: input, shape index: {}]
  %s1 = inlined_call_operand.vmem [shape: bf16[80,128], index: 1, kind: input, shape index: {}]
  %s2 = inlined_call_operand.vmem [shape: f32[8,128], index: 2, kind: input, shape index: {}]
  %s3 = inlined_call_operand.vmem [shape: f32[8,128], index: 3, kind: input, shape index: {}]
  %s4 = inlined_call_operand.vmem [shape: bf16[512,128], index: 4, kind: output, shape index: {}]
  %s5 = sld [smem:[#allocation0]]
  $region57: #{block_forward.2} parent=0
    _
  %s7 = ssub.s32 1, %s5
  %s8 = scalar_select 0, %s7, %s5
  loop: start=0, step=1, limit=4
  $region2: #{block_forward.2} parent=0 // loop_pre_header
    _
  $region3: #{block_forward.2} parent=0 // loop_header
    %s10 = sphi 0, %s14
    %p11 = scmp.ge.s32.totalorder %s10, 4
    %s17 = sphi 0, %s36
    %s18 = sphi 0, %s32
    %s19 = sphi 0, %s28
    %s20 = sphi 0, %s17
    %s21 = sphi 0, %s18
    %s22 = sphi 0, %s19
    %s23 = sphi 0, %s20
    %s24 = sphi 0, %s21
    %s25 = sphi 0, %s22
    %s41 = sphi 0, %s43
    %s44 = sphi 0, %s41
    %s45 = sphi 0, %s44
    %s61 = sphi 0, %s45
    %s69 = sphi 0, %s71
    %s72 = sphi 0, %s69
    %s73 = sphi 0, %s72
    %s89 = sphi 0, %s73
    %s95 = sphi 0, %s97
    %s98 = sphi 0, %s95
    %s99 = sphi 0, %s98
    %s115 = sphi 0, %s99
    %s121 = sphi 0, %s123
    %s124 = sphi 0, %s121
    %s125 = sphi 0, %s124
    %s141 = sphi 0, %s125
    %s149 = sphi 0, %s151
    %s152 = sphi 0, %s149
    %s153 = sphi 0, %s152
    %s169 = sphi 0, %s153
  $region4: #{block_forward.2} parent=0 // loop_header_branch
    %13 = sbr.rel (%p11) target = $region8
  $region5: #{block_forward.2} parent=0 // loop_body
    %s15 = ssub.s32 %s10, 1
    %s16 = ssub.s32 %s10, 2
    %s26 = sadd.s32 1, %s19
    %p27 = scmp.ge.s32.totalorder %s26, 1
    %s28 = scalar_select %p27, 0, %s26
    %s29 = sadd.s32 1, %s18
    %s30 = scalar_select %p27, %s29, %s18
    %p31 = scmp.ge.s32.totalorder %s30, 1
    %s32 = scalar_select %p31, 0, %s30
    %s33 = sadd.s32 1, %s17
    %s34 = scalar_select %p31, %s33, %s17
    %p35 = scmp.ge.s32.totalorder %s34, 2
    %s36 = scalar_select %p35, 0, %s34
    %s37 = ssub.s32 %s17, %s36
    %s38 = ssub.s32 %s19, %s28
    %s39 = sor.u32 %s37, %s38
    %p40 = scmp.eq.s32.totalorder %s39, 0
    %s42 = sadd.s32 %s41, 1
    %s43 = scalar_select %p40, %s41, %s42
    %p46 = pneg %p40
    %p47 = scmp.eq.s32.totalorder %s10, 1
    %p48 = por %p46, %p47
    %p49 = scmp.ne.s32.totalorder %s41, %s44
    %p50 = scmp.eq.s32.totalorder %s10, 0
    %p51 = por %p49, %p50
    %p52 = scmp.ne.s32.totalorder %s41, %s44
    %p53 = scmp.eq.s32.totalorder %s15, 1
    %p54 = por %p52, %p53
    %p55 = scmp.ne.s32.totalorder %s44, %s45
    %p56 = scmp.eq.s32.totalorder %s15, 0
    %p57 = por %p55, %p56
    %p58 = scmp.ne.s32.totalorder %s44, %s45
    %p59 = scmp.eq.s32.totalorder %s16, 1
    %p60 = por %p58, %p59
    %p62 = scmp.ne.s32.totalorder %s45, %s61
    %p63 = scmp.eq.s32.totalorder %s16, 0
    %p64 = por %p62, %p63
    %s65 = ssub.s32 %s19, %s28
    %s66 = ssub.s32 %s18, %s32
    %s67 = sor.u32 %s65, %s66
    %p68 = scmp.eq.s32.totalorder %s67, 0
    %s70 = sadd.s32 %s69, 1
    %s71 = scalar_select %p68, %s69, %s70
    %p74 = pneg %p68
    %p75 = scmp.eq.s32.totalorder %s10, 1
    %p76 = por %p74, %p75
    %p77 = scmp.ne.s32.totalorder %s69, %s72
    %p78 = scmp.eq.s32.totalorder %s10, 0
    %p79 = por %p77, %p78
    %p80 = scmp.ne.s32.totalorder %s69, %s72
    %p81 = scmp.eq.s32.totalorder %s15, 1
    %p82 = por %p80, %p81
    %p83 = scmp.ne.s32.totalorder %s72, %s73
    %p84 = scmp.eq.s32.totalorder %s15, 0
    %p85 = por %p83, %p84
    %p86 = scmp.ne.s32.totalorder %s72, %s73
    %p87 = scmp.eq.s32.totalorder %s16, 1
    %p88 = por %p86, %p87
    %p90 = scmp.ne.s32.totalorder %s73, %s89
    %p91 = scmp.eq.s32.totalorder %s16, 0
    %p92 = por %p90, %p91
    %s93 = ssub.s32 %s18, %s32
    %p94 = scmp.eq.s32.totalorder %s93, 0
    %s96 = sadd.s32 %s95, 1
    %s97 = scalar_select %p94, %s95, %s96
    %p100 = pneg %p94
    %p101 = scmp.eq.s32.totalorder %s10, 1
    %p102 = por %p100, %p101
    %p103 = scmp.ne.s32.totalorder %s95, %s98
    %p104 = scmp.eq.s32.totalorder %s10, 0
    %p105 = por %p103, %p104
    %p106 = scmp.ne.s32.totalorder %s95, %s98
    %p107 = scmp.eq.s32.totalorder %s15, 1
    %p108 = por %p106, %p107
    %p109 = scmp.ne.s32.totalorder %s98, %s99
    %p110 = scmp.eq.s32.totalorder %s15, 0
    %p111 = por %p109, %p110
    %p112 = scmp.ne.s32.totalorder %s98, %s99
    %p113 = scmp.eq.s32.totalorder %s16, 1
    %p114 = por %p112, %p113
    %p116 = scmp.ne.s32.totalorder %s99, %s115
    %p117 = scmp.eq.s32.totalorder %s16, 0
    %p118 = por %p116, %p117
    %s119 = ssub.s32 %s18, %s32
    %p120 = scmp.eq.s32.totalorder %s119, 0
    %s122 = sadd.s32 %s121, 1
    %s123 = scalar_select %p120, %s121, %s122
    %p126 = pneg %p120
    %p127 = scmp.eq.s32.totalorder %s10, 1
    %p128 = por %p126, %p127
    %p129 = scmp.ne.s32.totalorder %s121, %s124
    %p130 = scmp.eq.s32.totalorder %s10, 0
    %p131 = por %p129, %p130
    %p132 = scmp.ne.s32.totalorder %s121, %s124
    %p133 = scmp.eq.s32.totalorder %s15, 1
    %p134 = por %p132, %p133
    %p135 = scmp.ne.s32.totalorder %s124, %s125
    %p136 = scmp.eq.s32.totalorder %s15, 0
    %p137 = por %p135, %p136
    %p138 = scmp.ne.s32.totalorder %s124, %s125
    %p139 = scmp.eq.s32.totalorder %s16, 1
    %p140 = por %p138, %p139
    %p142 = scmp.ne.s32.totalorder %s125, %s141
    %p143 = scmp.eq.s32.totalorder %s16, 0
    %p144 = por %p142, %p143
    %s145 = ssub.s32 %s17, %s36
    %s146 = ssub.s32 %s18, %s32
    %s147 = sor.u32 %s145, %s146
    %p148 = scmp.eq.s32.totalorder %s147, 0
    %s150 = sadd.s32 %s149, 1
    %s151 = scalar_select %p148, %s149, %s150
    %p154 = pneg %p148
    %p155 = scmp.eq.s32.totalorder %s10, 1
    %p156 = por %p154, %p155
    %p157 = scmp.ne.s32.totalorder %s149, %s152
    %p158 = scmp.eq.s32.totalorder %s10, 0
    %p159 = por %p157, %p158
    %p160 = scmp.ne.s32.totalorder %s149, %s152
    %p161 = scmp.eq.s32.totalorder %s15, 1
    %p162 = por %p160, %p161
    %p163 = scmp.ne.s32.totalorder %s152, %s153
    %p164 = scmp.eq.s32.totalorder %s15, 0
    %p165 = por %p163, %p164
    %p166 = scmp.ne.s32.totalorder %s152, %s153
    %p167 = scmp.eq.s32.totalorder %s16, 1
    %p168 = por %p166, %p167
    %p170 = scmp.ne.s32.totalorder %s153, %s169
    %p171 = scmp.eq.s32.totalorder %s16, 0
    %p172 = por %p170, %p171
    %p173 = scmp.le.s32.totalorder 1, %s10
    %p174 = scmp.lt.s32.totalorder %s10, 3
    %p175 = pnand %p173, %p174
    %p176 = pneg %p175
    // Predicated region
    $region9: #{block_forward.2} parent=5 // pred_check
      _
    $region10: #{block_forward.2} parent=5 // pred_check_branch
      %178 = sbr.rel (%p175) target = $region12
    $region11: #{block_forward.2} parent=5 // pred_region
      %s179 = ssub.s32 %s10, 1
      // Predicated region
      $region13: #{block_forward.2} parent=11 // pred_check
        %p180 = pneg %p85
      $region14: #{block_forward.2} parent=11 // pred_check_branch
        %182 = sbr.rel (%p180) target = $region16
      $region15: #{block_forward.2} parent=11 // pred_region
        %s183 = smul.u32 10, %s22
        %p184 = scmp.lt.s32.totalorder %s183, 9
        %s185 = scalar_select %p184, %s183, 9
        %p186 = scmp.lt.s32.totalorder %s21, 0
        %s187 = scalar_select %p186, %s21, 0
        %s188 = sadd.s32 %s187, %s185
        %s189 = smul.addr %s188, 4
        %s190 = scalar_lea.vmem %s1, %s189
        %s191 = smul.u32 10, %s22
      $region16: #{block_forward.2} parent=11 // pred_fallthru
        _
      // Predicated region
      $region17: #{block_forward.2} parent=11 // pred_check
        %p192 = pneg %p111
      $region18: #{block_forward.2} parent=11 // pred_check_branch
        %194 = sbr.rel (%p192) target = $region20
      $region19: #{block_forward.2} parent=11 // pred_region
        %p195 = scmp.lt.s32.totalorder %s21, 0
        %s196 = scalar_select %p195, %s21, 0
        %s197 = smul.addr %s196, 8
        %s198 = scalar_lea.vmem %s2, %s197
      $region20: #{block_forward.2} parent=11 // pred_fallthru
        _
      // Predicated region
      $region21: #{block_forward.2} parent=11 // pred_check
        %p199 = pneg %p137
      $region22: #{block_forward.2} parent=11 // pred_check_branch
        %201 = sbr.rel (%p199) target = $region24
      $region23: #{block_forward.2} parent=11 // pred_region
        %p202 = scmp.lt.s32.totalorder %s21, 0
        %s203 = scalar_select %p202, %s21, 0
        %s204 = smul.addr %s203, 8
        %s205 = scalar_lea.vmem %s3, %s204
      $region24: #{block_forward.2} parent=11 // pred_fallthru
        _
    $region12: #{block_forward.2} parent=5 // pred_fallthru
      _
    %p206 = scmp.lt.s32.totalorder %s10, 2
    // Predicated region
    $region25: #{block_forward.2} parent=5 // pred_check
      %p207 = pneg %p206
    $region26: #{block_forward.2} parent=5 // pred_check_branch
      %209 = sbr.rel (%p207) target = $region28
    $region27: #{block_forward.2} parent=5 // pred_region
      // Predicated region
      $region29: #{block_forward.2} parent=27 // pred_check
        %p210 = pneg %p51
      $region30: #{block_forward.2} parent=27 // pred_check_branch
        %212 = sbr.rel (%p210) target = $region32
      $region31: #{block_forward.2} parent=27 // pred_region
        %s213 = smul.u32 32, %s17
        %p214 = scmp.lt.s32.totalorder %s213, 63
        %s215 = scalar_select %p214, %s213, 63
        %p216 = scmp.lt.s32.totalorder %s19, 0
        %s217 = scalar_select %p216, %s19, 0
        %s218 = sadd.s32 %s217, %s215
        %s219 = smul.addr %s218, 4
        %s220 = scalar_lea.vmem %s0, %s219
        %s221 = smul.u32 32, %s17
      $region32: #{block_forward.2} parent=27 // pred_fallthru
        _
    $region28: #{block_forward.2} parent=5 // pred_fallthru
      _
    %p222 = scmp.le.s32.totalorder 1, %s10
    %p223 = scmp.lt.s32.totalorder %s10, 3
    %p224 = pnand %p222, %p223
    %p225 = pneg %p224
    // Predicated region
    $region33: #{block_forward.2} parent=5 // pred_check
      _
    $region34: #{block_forward.2} parent=5 // pred_check_branch
      %227 = sbr.rel (%p224) target = $region36
    $region35: #{block_forward.2} parent=5 // pred_region
      %s228 = ssub.s32 %s10, 1
      %s229 = smul.u32 32, %s20
      %p230 = scmp.lt.s32.totalorder %s229, 63
      %s231 = scalar_select %p230, %s229, 63
      %p232 = scmp.lt.s32.totalorder %s22, 0
      %s233 = scalar_select %p232, %s22, 0
      %s234 = sadd.s32 %s233, %s231
      %s235 = smul.addr %s234, 4
      %s236 = scalar_lea.vmem %s0, %s235
      %p237 = pneg %p57
      %p238 = pneg %p54
      %s239 = smul.u32 10, %s22
      %p240 = scmp.lt.s32.totalorder %s239, 9
      %s241 = scalar_select %p240, %s239, 9
      %p242 = scmp.lt.s32.totalorder %s21, 0
      %s243 = scalar_select %p242, %s21, 0
      %s244 = sadd.s32 %s243, %s241
      %s245 = smul.addr %s244, 4
      %s246 = scalar_lea.vmem %s1, %s245
      %p247 = pneg %p85
      %p248 = pneg %p82
      %p249 = scmp.lt.s32.totalorder %s21, 0
      %s250 = scalar_select %p249, %s21, 0
      %s251 = smul.addr %s250, 8
      %s252 = scalar_lea.vmem %s2, %s251
      %p253 = pneg %p111
      %p254 = pneg %p108
      %p255 = scmp.lt.s32.totalorder %s21, 0
      %s256 = scalar_select %p255, %s21, 0
      %s257 = smul.addr %s256, 8
      %s258 = scalar_lea.vmem %s3, %s257
      %p259 = pneg %p137
      %p260 = pneg %p134
      %p261 = pneg %p165
      %p262 = pneg %p162
      %s263 = smul.u32 32, %s20
      %p264 = scmp.lt.s32.totalorder %s263, 63
      %s265 = scalar_select %p264, %s263, 63
      %p266 = scmp.lt.s32.totalorder %s21, 0
      %s267 = scalar_select %p266, %s21, 0
      %s268 = sadd.s32 %s267, %s265
      %s269 = smul.addr %s268, 4
      %s270 = scalar_lea.vmem %s4, %s269
      %s271 = smul.u32 32, %s20
      %p272 = scmp.lt.s32.totalorder %s271, 63
      %s273 = scalar_select %p272, %s271, 63
      %p274 = scmp.lt.s32.totalorder %s22, 0
      %s275 = scalar_select %p274, %s22, 0
      %s276 = sadd.s32 %s275, %s273
      %s277 = smul.addr %s276, 4
      %s278 = scalar_lea.vmem %s0, %s277
      %s279 = smul.u32 32, %s20
      %s280 = smul.u32 10, %s22
      %p281 = scmp.lt.s32.totalorder %s280, 9
      %s282 = scalar_select %p281, %s280, 9
      %p283 = scmp.lt.s32.totalorder %s21, 0
      %s284 = scalar_select %p283, %s21, 0
      %s285 = sadd.s32 %s284, %s282
      %s286 = smul.addr %s285, 4
      %s287 = scalar_lea.vmem %s1, %s286
      %s288 = smul.u32 10, %s22
      %p289 = scmp.lt.s32.totalorder %s21, 0
      %s290 = scalar_select %p289, %s21, 0
      %s291 = smul.addr %s290, 8
      %s292 = scalar_lea.vmem %s2, %s291
      %p293 = scmp.lt.s32.totalorder %s21, 0
      %s294 = scalar_select %p293, %s21, 0
      %s295 = smul.addr %s294, 8
      %s296 = scalar_lea.vmem %s3, %s295
      %s297 = smul.u32 32, %s20
      %p298 = scmp.lt.s32.totalorder %s297, 63
      %s299 = scalar_select %p298, %s297, 63
      %p300 = scmp.lt.s32.totalorder %s21, 0
      %s301 = scalar_select %p300, %s21, 0
      %s302 = sadd.s32 %s301, %s299
      %s303 = smul.addr %s302, 4
      %s304 = scalar_lea.vmem %s4, %s303
      %s305 = smul.u32 32, %s20
      %p307 = scmp.eq.s32.totalorder %s22, 0
      // Predicated region
      $region37: #{block_forward.2} parent=35 // pred_check
        %p308 = pneg %p307
      $region38: #{block_forward.2} parent=35 // pred_check_branch
        %310 = sbr.rel (%p308) target = $region40
      $region39: #{block_forward.2} parent=35 // pred_region
        %311 = vst [vmem:[#allocation2] sm:$0xff] 0.0
        %312 = vst [vmem:[#allocation2 + $0x8] sm:$0xff] 0.0
        %313 = vst [vmem:[#allocation2 + $0x10] sm:$0xff] 0.0
        %314 = vst [vmem:[#allocation2 + $0x18] sm:$0xff] 0.0
        %315 = vst [vmem:[#allocation2 + $0x20] sm:$0xff] 0.0
        %316 = vst [vmem:[#allocation2 + $0x28] sm:$0xff] 0.0
        %317 = vst [vmem:[#allocation2 + $0x30] sm:$0xff] 0.0
        %318 = vst [vmem:[#allocation2 + $0x38] sm:$0xff] 0.0
        %319 = vst [vmem:[#allocation2 + $0x40] sm:$0xff] 0.0
        %320 = vst [vmem:[#allocation2 + $0x48] sm:$0xff] 0.0
        %321 = vst [vmem:[#allocation2 + $0x50] sm:$0xff] 0.0
        %322 = vst [vmem:[#allocation2 + $0x58] sm:$0xff] 0.0
        %323 = vst [vmem:[#allocation2 + $0x60] sm:$0xff] 0.0
        %324 = vst [vmem:[#allocation2 + $0x68] sm:$0xff] 0.0
        %325 = vst [vmem:[#allocation2 + $0x70] sm:$0xff] 0.0
        %326 = vst [vmem:[#allocation2 + $0x78] sm:$0xff] 0.0
        %327 = vst [vmem:[#allocation2 + $0x80] sm:$0xff] 0.0
        %328 = vst [vmem:[#allocation2 + $0x88] sm:$0xff] 0.0
        %329 = vst [vmem:[#allocation2 + $0x90] sm:$0xff] 0.0
        %330 = vst [vmem:[#allocation2 + $0x98] sm:$0xff] 0.0
        %331 = vst [vmem:[#allocation2 + $0xa0] sm:$0xff] 0.0
        %332 = vst [vmem:[#allocation2 + $0xa8] sm:$0xff] 0.0
        %333 = vst [vmem:[#allocation2 + $0xb0] sm:$0xff] 0.0
        %334 = vst [vmem:[#allocation2 + $0xb8] sm:$0xff] 0.0
        %335 = vst [vmem:[#allocation2 + $0xc0] sm:$0xff] 0.0
        %336 = vst [vmem:[#allocation2 + $0xc8] sm:$0xff] 0.0
        %337 = vst [vmem:[#allocation2 + $0xd0] sm:$0xff] 0.0
        %338 = vst [vmem:[#allocation2 + $0xd8] sm:$0xff] 0.0
        %339 = vst [vmem:[#allocation2 + $0xe0] sm:$0xff] 0.0
        %340 = vst [vmem:[#allocation2 + $0xe8] sm:$0xff] 0.0
        %341 = vst [vmem:[#allocation2 + $0xf0] sm:$0xff] 0.0
        %342 = vst [vmem:[#allocation2 + $0xf8] sm:$0xff] 0.0
      $region40: #{block_forward.2} parent=35 // pred_fallthru
        _
      %v343 = vld [vmem:[#allocation2] sm:$0xff]
      %v344 = vld [vmem:[#allocation2 + $0x8] sm:$0xff]
      %v345 = vld [vmem:[#allocation2 + $0x10] sm:$0xff]
      %v346 = vld [vmem:[#allocation2 + $0x18] sm:$0xff]
      %v347 = vld [vmem:[#allocation2 + $0x20] sm:$0xff]
      %v348 = vld [vmem:[#allocation2 + $0x28] sm:$0xff]
      %v349 = vld [vmem:[#allocation2 + $0x30] sm:$0xff]
      %v350 = vld [vmem:[#allocation2 + $0x38] sm:$0xff]
      %v351 = vld [vmem:[#allocation2 + $0x40] sm:$0xff]
      %v352 = vld [vmem:[#allocation2 + $0x48] sm:$0xff]
      %v353 = vld [vmem:[#allocation2 + $0x50] sm:$0xff]
      %v354 = vld [vmem:[#allocation2 + $0x58] sm:$0xff]
      %v355 = vld [vmem:[#allocation2 + $0x60] sm:$0xff]
      %v356 = vld [vmem:[#allocation2 + $0x68] sm:$0xff]
      %v357 = vld [vmem:[#allocation2 + $0x70] sm:$0xff]
      %v358 = vld [vmem:[#allocation2 + $0x78] sm:$0xff]
      %v359 = vld [vmem:[#allocation2 + $0x80] sm:$0xff]
      %v360 = vld [vmem:[#allocation2 + $0x88] sm:$0xff]
      %v361 = vld [vmem:[#allocation2 + $0x90] sm:$0xff]
      %v362 = vld [vmem:[#allocation2 + $0x98] sm:$0xff]
      %v363 = vld [vmem:[#allocation2 + $0xa0] sm:$0xff]
      %v364 = vld [vmem:[#allocation2 + $0xa8] sm:$0xff]
      %v365 = vld [vmem:[#allocation2 + $0xb0] sm:$0xff]
      %v366 = vld [vmem:[#allocation2 + $0xb8] sm:$0xff]
      %v367 = vld [vmem:[#allocation2 + $0xc0] sm:$0xff]
      %v368 = vld [vmem:[#allocation2 + $0xc8] sm:$0xff]
      %v369 = vld [vmem:[#allocation2 + $0xd0] sm:$0xff]
      %v370 = vld [vmem:[#allocation2 + $0xd8] sm:$0xff]
      %v371 = vld [vmem:[#allocation2 + $0xe0] sm:$0xff]
      %v372 = vld [vmem:[#allocation2 + $0xe8] sm:$0xff]
      %v373 = vld [vmem:[#allocation2 + $0xf0] sm:$0xff]
      %v374 = vld [vmem:[#allocation2 + $0xf8] sm:$0xff]
      %v375 = vld [vmem:[%s278] sm:$0xf]
      %v376 = vld [vmem:[%s278 + $0x4] sm:$0xf]
      %v377 = vld [vmem:[%s278 + $0x8] sm:$0xf]
      %v378 = vld [vmem:[%s278 + $0xc] sm:$0xf]
      %v379 = vld [vmem:[%s278 + $0x10] sm:$0xf]
      %v380 = vld [vmem:[%s278 + $0x14] sm:$0xf]
      %v381 = vld [vmem:[%s278 + $0x18] sm:$0xf]
      %v382 = vld [vmem:[%s278 + $0x1c] sm:$0xf]
      %v383 = vld [vmem:[%s278 + $0x20] sm:$0xf]
      %v384 = vld [vmem:[%s278 + $0x24] sm:$0xf]
      %v385 = vld [vmem:[%s278 + $0x28] sm:$0xf]
      %v386 = vld [vmem:[%s278 + $0x2c] sm:$0xf]
      %v387 = vld [vmem:[%s278 + $0x30] sm:$0xf]
      %v388 = vld [vmem:[%s278 + $0x34] sm:$0xf]
      %v389 = vld [vmem:[%s278 + $0x38] sm:$0xf]
      %v390 = vld [vmem:[%s278 + $0x3c] sm:$0xf]
      %v391 = vld [vmem:[%s278 + $0x40] sm:$0xf]
      %v392 = vld [vmem:[%s278 + $0x44] sm:$0xf]
      %v393 = vld [vmem:[%s278 + $0x48] sm:$0xf]
      %v394 = vld [vmem:[%s278 + $0x4c] sm:$0xf]
      %v395 = vld [vmem:[%s278 + $0x50] sm:$0xf]
      %v396 = vld [vmem:[%s278 + $0x54] sm:$0xf]
      %v397 = vld [vmem:[%s278 + $0x58] sm:$0xf]
      %v398 = vld [vmem:[%s278 + $0x5c] sm:$0xf]
      %v399 = vld [vmem:[%s278 + $0x60] sm:$0xf]
      %v400 = vld [vmem:[%s278 + $0x64] sm:$0xf]
      %v401 = vld [vmem:[%s278 + $0x68] sm:$0xf]
      %v402 = vld [vmem:[%s278 + $0x6c] sm:$0xf]
      %v403 = vld [vmem:[%s278 + $0x70] sm:$0xf]
      %v404 = vld [vmem:[%s278 + $0x74] sm:$0xf]
      %v405 = vld [vmem:[%s278 + $0x78] sm:$0xf]
      %v406 = vld [vmem:[%s278 + $0x7c] sm:$0xf]
      %v407 = vld [vmem:[%s287] sm:$0xf]
      %v408 = vld [vmem:[%s287 + $0x4] sm:$0xf]
      %v409 = vld [vmem:[%s287 + $0x8] sm:$0xf]
      %v410 = vld [vmem:[%s287 + $0xc] sm:$0xf]
      %v411 = vld [vmem:[%s287 + $0x10] sm:$0xf]
      %v412 = vld [vmem:[%s287 + $0x14] sm:$0xf]
      %v413 = vld [vmem:[%s287 + $0x18] sm:$0xf]
      %v414 = vld [vmem:[%s287 + $0x1c] sm:$0xf]
      %v415 = vld [vmem:[%s287 + $0x20] sm:$0xf]
      %v416 = vld [vmem:[%s287 + $0x24] sm:$0xf]
      %v449 = vunpack.c.l.b16 %v375
      %v450 = vunpack.c.l.b16 %v376
      %v451 = vunpack.c.l.b16 %v377
      %v452 = vunpack.c.l.b16 %v378
      %v453 = vunpack.c.l.b16 %v379
      %v454 = vunpack.c.l.b16 %v380
      %v455 = vunpack.c.l.b16 %v381
      %v456 = vunpack.c.l.b16 %v382
      %v457 = vunpack.c.l.b16 %v383
      %v458 = vunpack.c.l.b16 %v384
      %v459 = vunpack.c.l.b16 %v385
      %v460 = vunpack.c.l.b16 %v386
      %v461 = vunpack.c.l.b16 %v387
      %v462 = vunpack.c.l.b16 %v388
      %v463 = vunpack.c.l.b16 %v389
      %v464 = vunpack.c.l.b16 %v390
      %v465 = vunpack.c.l.b16 %v391
      %v466 = vunpack.c.l.b16 %v392
      %v467 = vunpack.c.l.b16 %v393
      %v468 = vunpack.c.l.b16 %v394
      %v469 = vunpack.c.l.b16 %v395
      %v470 = vunpack.c.l.b16 %v396
      %v471 = vunpack.c.l.b16 %v397
      %v472 = vunpack.c.l.b16 %v398
      %v473 = vunpack.c.l.b16 %v399
      %v474 = vunpack.c.l.b16 %v400
      %v475 = vunpack.c.l.b16 %v401
      %v476 = vunpack.c.l.b16 %v402
      %v477 = vunpack.c.l.b16 %v403
      %v478 = vunpack.c.l.b16 %v404
      %v479 = vunpack.c.l.b16 %v405
      %v480 = vunpack.c.l.b16 %v406
      %v481 = vpack.c.b16 %v450, %v449
      %v482 = vpack.c.b16 %v452, %v451
      %v483 = vpack.c.b16 %v454, %v453
      %v484 = vpack.c.b16 %v456, %v455
      %v485 = vpack.c.b16 %v458, %v457
      %v486 = vpack.c.b16 %v460, %v459
      %v487 = vpack.c.b16 %v462, %v461
      %v488 = vpack.c.b16 %v464, %v463
      %v489 = vpack.c.b16 %v466, %v465
      %v490 = vpack.c.b16 %v468, %v467
      %v491 = vpack.c.b16 %v470, %v469
      %v492 = vpack.c.b16 %v472, %v471
      %v493 = vpack.c.b16 %v474, %v473
      %v494 = vpack.c.b16 %v476, %v475
      %v495 = vpack.c.b16 %v478, %v477
      %v496 = vpack.c.b16 %v480, %v479
      %v507 = vunpack.c.l.b16 %v407
      %v508 = vunpack.c.l.b16 %v408
      %v509 = vunpack.c.l.b16 %v409
      %v510 = vunpack.c.l.b16 %v410
      %v511 = vunpack.c.l.b16 %v411
      %v512 = vunpack.c.l.b16 %v412
      %v513 = vunpack.c.l.b16 %v413
      %v514 = vunpack.c.l.b16 %v414
      %v515 = vunpack.c.l.b16 %v415
      %v516 = vunpack.c.l.b16 %v416
      %v517 = vpack.c.b16 %v508, %v507
      %v518 = vpack.c.b16 %v510, %v509
      %v519 = vpack.c.b16 %v512, %v511
      %v520 = vpack.c.b16 %v514, %v513
      %v521 = vpack.c.b16 %v516, %v515
      %vm527 = vcmask 654336
      %v529 = vsel %vm527, %v481, 0
      %v532 = vsel %vm527, %v482, 0
      %v535 = vsel %vm527, %v483, 0
      %v538 = vsel %vm527, %v484, 0
      %v541 = vsel %vm527, %v485, 0
      %v544 = vsel %vm527, %v486, 0
      %v547 = vsel %vm527, %v487, 0
      %v550 = vsel %vm527, %v488, 0
      %v553 = vsel %vm527, %v489, 0
      %v556 = vsel %vm527, %v490, 0
      %v559 = vsel %vm527, %v491, 0
      %v562 = vsel %vm527, %v492, 0
      %v565 = vsel %vm527, %v493, 0
      %v568 = vsel %vm527, %v494, 0
      %v571 = vsel %vm527, %v495, 0
      %v574 = vsel %vm527, %v496, 0
      %576 = vmatprep.subr.bf16.mxu0 0
      %577 = vmatpush1.bf16.msra.mxu0 %v517
      %578 = vmatprep.subr.bf16.mxu0 0
      %579 = vmatpush1.bf16.msra.mxu0 %v518
      %580 = vmatprep.subr.bf16.mxu0 0
      %581 = vmatpush1.bf16.msra.mxu0 %v519
      %582 = vmatprep.subr.bf16.mxu0 0
      %583 = vmatpush1.bf16.msra.mxu0 %v520
      %584 = vmatprep.subr.bf16.mxu0 0
      %585 = vmatpush1.bf16.msra.mxu0 %v521
      %586 = vmatprep.subr.bf16.mxu0 0
      %587 = vmatpush1.bf16.msra.mxu0 0
      %588 = vmatprep.subr.bf16.mxu0 0
      %589 = vmatpush1.bf16.msra.mxu0 0
      %590 = vmatprep.subr.bf16.mxu0 0
      %591 = vmatpush1.bf16.msra.mxu0 0
      %592 = vmatprep.subr.bf16.mxu0 0
      %593 = vmatpush1.bf16.msra.mxu0 0
      %594 = vmatprep.subr.bf16.mxu0 0
      %595 = vmatpush1.bf16.msra.mxu0 0
      %596 = vmatprep.subr.bf16.mxu0 0
      %597 = vmatpush1.bf16.msra.mxu0 0
      %598 = vmatprep.subr.bf16.mxu0 0
      %599 = vmatpush1.bf16.msra.mxu0 0
      %600 = vmatprep.subr.bf16.mxu0 0
      %601 = vmatpush1.bf16.msra.mxu0 0
      %602 = vmatprep.subr.bf16.mxu0 0
      %603 = vmatpush1.bf16.msra.mxu0 0
      %604 = vmatprep.subr.bf16.mxu0 0
      %605 = vmatpush1.bf16.msra.mxu0 0
      %606 = vmatprep.subr.bf16.mxu0 0
      %607 = vmatpush1.bf16.msra.mxu0 0
      %608 = vmatprep.mubr.bf16.mxu0 0
      %609 = vmatmul.mubr.bf16.gmra.mrb[0].mxu0 %v529
      %v610 = vpop.f32.mrb[0].mxu0
      %v611 = vadd.f32 0.0, %v610
      %v612 = vpop.f32.mrb[0].mxu0
      %v613 = vpop.f32.mrb[0].mxu0
      %v614 = vadd.f32 0.0, %v613
      %v615 = vpop.f32.mrb[0].mxu0
      %616 = vmatprep.mubr.bf16.mxu0 0
      %617 = vmatmul.mubr.bf16.gmra.mrb[0].mxu0 %v532
      %v618 = vpop.f32.mrb[0].mxu0
      %v619 = vadd.f32 0.0, %v618
      %v620 = vpop.f32.mrb[0].mxu0
      %v621 = vpop.f32.mrb[0].mxu0
      %v622 = vadd.f32 0.0, %v621
      %v623 = vpop.f32.mrb[0].mxu0
      %624 = vmatprep.mubr.bf16.mxu0 0
      %625 = vmatmul.mubr.bf16.gmra.mrb[0].mxu0 %v535
      %v626 = vpop.f32.mrb[0].mxu0
      %v627 = vadd.f32 0.0, %v626
      %v628 = vpop.f32.mrb[0].mxu0
      %v629 = vpop.f32.mrb[0].mxu0
      %v630 = vadd.f32 0.0, %v629
      %v631 = vpop.f32.mrb[0].mxu0
      %632 = vmatprep.mubr.bf16.mxu0 0
      %633 = vmatmul.mubr.bf16.gmra.mrb[0].mxu0 %v538
      %v634 = vpop.f32.mrb[0].mxu0
      %v635 = vadd.f32 0.0, %v634
      %v636 = vpop.f32.mrb[0].mxu0
      %v637 = vpop.f32.mrb[0].mxu0
      %v638 = vadd.f32 0.0, %v637
      %v639 = vpop.f32.mrb[0].mxu0
      %640 = vmatprep.mubr.bf16.mxu0 0
      %641 = vmatmul.mubr.bf16.gmra.mrb[0].mxu0 %v541
      %v642 = vpop.f32.mrb[0].mxu0
      %v643 = vadd.f32 0.0, %v642
      %v644 = vpop.f32.mrb[0].mxu0
      %v645 = vpop.f32.mrb[0].mxu0
      %v646 = vadd.f32 0.0, %v645
      %v647 = vpop.f32.mrb[0].mxu0
      %648 = vmatprep.mubr.bf16.mxu0 0
      %649 = vmatmul.mubr.bf16.gmra.mrb[0].mxu0 %v544
      %v650 = vpop.f32.mrb[0].mxu0
      %v651 = vadd.f32 0.0, %v650
      %v652 = vpop.f32.mrb[0].mxu0
      %v653 = vpop.f32.mrb[0].mxu0
      %v654 = vadd.f32 0.0, %v653
      %v655 = vpop.f32.mrb[0].mxu0
      %656 = vmatprep.mubr.bf16.mxu0 0
      %657 = vmatmul.mubr.bf16.gmra.mrb[0].mxu0 %v547
      %v658 = vpop.f32.mrb[0].mxu0
      %v659 = vadd.f32 0.0, %v658
      %v660 = vpop.f32.mrb[0].mxu0
      %v661 = vpop.f32.mrb[0].mxu0
      %v662 = vadd.f32 0.0, %v661
      %v663 = vpop.f32.mrb[0].mxu0
      %664 = vmatprep.mubr.bf16.mxu0 0
      %665 = vmatmul.mubr.bf16.gmra.mrb[0].mxu0 %v550
      %v666 = vpop.f32.mrb[0].mxu0
      %v667 = vadd.f32 0.0, %v666
      %v668 = vpop.f32.mrb[0].mxu0
      %v669 = vpop.f32.mrb[0].mxu0
      %v670 = vadd.f32 0.0, %v669
      %v671 = vpop.f32.mrb[0].mxu0
      %672 = vmatprep.mubr.bf16.mxu0 0
      %673 = vmatmul.mubr.bf16.gmra.mrb[0].mxu0 %v553
      %v674 = vpop.f32.mrb[0].mxu0
      %v675 = vadd.f32 0.0, %v674
      %v676 = vpop.f32.mrb[0].mxu0
      %v677 = vpop.f32.mrb[0].mxu0
      %v678 = vadd.f32 0.0, %v677
      %v679 = vpop.f32.mrb[0].mxu0
      %680 = vmatprep.mubr.bf16.mxu0 0
      %681 = vmatmul.mubr.bf16.gmra.mrb[0].mxu0 %v556
      %v682 = vpop.f32.mrb[0].mxu0
      %v683 = vadd.f32 0.0, %v682
      %v684 = vpop.f32.mrb[0].mxu0
      %v685 = vpop.f32.mrb[0].mxu0
      %v686 = vadd.f32 0.0, %v685
      %v687 = vpop.f32.mrb[0].mxu0
      %688 = vmatprep.mubr.bf16.mxu0 0
      %689 = vmatmul.mubr.bf16.gmra.mrb[0].mxu0 %v559
      %v690 = vpop.f32.mrb[0].mxu0
      %v691 = vadd.f32 0.0, %v690
      %v692 = vpop.f32.mrb[0].mxu0
      %v693 = vpop.f32.mrb[0].mxu0
      %v694 = vadd.f32 0.0, %v693
      %v695 = vpop.f32.mrb[0].mxu0
      %696 = vmatprep.mubr.bf16.mxu0 0
      %697 = vmatmul.mubr.bf16.gmra.mrb[0].mxu0 %v562
      %v698 = vpop.f32.mrb[0].mxu0
      %v699 = vadd.f32 0.0, %v698
      %v700 = vpop.f32.mrb[0].mxu0
      %v701 = vpop.f32.mrb[0].mxu0
      %v702 = vadd.f32 0.0, %v701
      %v703 = vpop.f32.mrb[0].mxu0
      %704 = vmatprep.mubr.bf16.mxu0 0
      %705 = vmatmul.mubr.bf16.gmra.mrb[0].mxu0 %v565
      %v706 = vpop.f32.mrb[0].mxu0
      %v707 = vadd.f32 0.0, %v706
      %v708 = vpop.f32.mrb[0].mxu0
      %v709 = vpop.f32.mrb[0].mxu0
      %v710 = vadd.f32 0.0, %v709
      %v711 = vpop.f32.mrb[0].mxu0
      %712 = vmatprep.mubr.bf16.mxu0 0
      %713 = vmatmul.mubr.bf16.gmra.mrb[0].mxu0 %v568
      %v714 = vpop.f32.mrb[0].mxu0
      %v715 = vadd.f32 0.0, %v714
      %v716 = vpop.f32.mrb[0].mxu0
      %v717 = vpop.f32.mrb[0].mxu0
      %v718 = vadd.f32 0.0, %v717
      %v719 = vpop.f32.mrb[0].mxu0
      %720 = vmatprep.mubr.bf16.mxu0 0
      %721 = vmatmul.mubr.bf16.gmra.mrb[0].mxu0 %v571
      %v722 = vpop.f32.mrb[0].mxu0
      %v723 = vadd.f32 0.0, %v722
      %v724 = vpop.f32.mrb[0].mxu0
      %v725 = vpop.f32.mrb[0].mxu0
      %v726 = vadd.f32 0.0, %v725
      %v727 = vpop.f32.mrb[0].mxu0
      %728 = vmatprep.mubr.bf16.mxu0 0
      %729 = vmatmul.mubr.bf16.gmra.mrb[0].mxu0 %v574
      %v730 = vpop.f32.mrb[0].mxu0
      %v731 = vadd.f32 0.0, %v730
      %v732 = vpop.f32.mrb[0].mxu0
      %v733 = vpop.f32.mrb[0].mxu0
      %v734 = vadd.f32 0.0, %v733
      %v735 = vpop.f32.mrb[0].mxu0
      %736 = vdwg.mxu0
      %v737 = vadd.f32 %v343, %v611
      %v738 = vadd.f32 %v344, %v614
      %v739 = vadd.f32 %v345, %v619
      %v740 = vadd.f32 %v346, %v622
      %v741 = vadd.f32 %v347, %v627
      %v742 = vadd.f32 %v348, %v630
      %v743 = vadd.f32 %v349, %v635
      %v744 = vadd.f32 %v350, %v638
      %v745 = vadd.f32 %v351, %v643
      %v746 = vadd.f32 %v352, %v646
      %v747 = vadd.f32 %v353, %v651
      %v748 = vadd.f32 %v354, %v654
      %v749 = vadd.f32 %v355, %v659
      %v750 = vadd.f32 %v356, %v662
      %v751 = vadd.f32 %v357, %v667
      %v752 = vadd.f32 %v358, %v670
      %v753 = vadd.f32 %v359, %v675
      %v754 = vadd.f32 %v360, %v678
      %v755 = vadd.f32 %v361, %v683
      %v756 = vadd.f32 %v362, %v686
      %v757 = vadd.f32 %v363, %v691
      %v758 = vadd.f32 %v364, %v694
      %v759 = vadd.f32 %v365, %v699
      %v760 = vadd.f32 %v366, %v702
      %v761 = vadd.f32 %v367, %v707
      %v762 = vadd.f32 %v368, %v710
      %v763 = vadd.f32 %v369, %v715
      %v764 = vadd.f32 %v370, %v718
      %v765 = vadd.f32 %v371, %v723
      %v766 = vadd.f32 %v372, %v726
      %v767 = vadd.f32 %v373, %v731
      %v768 = vadd.f32 %v374, %v734
      %769 = vst [vmem:[#allocation2] sm:$0xff] %v737
      %770 = vst [vmem:[#allocation2 + $0x8] sm:$0xff] %v738
      %771 = vst [vmem:[#allocation2 + $0x10] sm:$0xff] %v739
      %772 = vst [vmem:[#allocation2 + $0x18] sm:$0xff] %v740
      %773 = vst [vmem:[#allocation2 + $0x20] sm:$0xff] %v741
      %774 = vst [vmem:[#allocation2 + $0x28] sm:$0xff] %v742
      %775 = vst [vmem:[#allocation2 + $0x30] sm:$0xff] %v743
      %776 = vst [vmem:[#allocation2 + $0x38] sm:$0xff] %v744
      %777 = vst [vmem:[#allocation2 + $0x40] sm:$0xff] %v745
      %778 = vst [vmem:[#allocation2 + $0x48] sm:$0xff] %v746
      %779 = vst [vmem:[#allocation2 + $0x50] sm:$0xff] %v747
      %780 = vst [vmem:[#allocation2 + $0x58] sm:$0xff] %v748
      %781 = vst [vmem:[#allocation2 + $0x60] sm:$0xff] %v749
      %782 = vst [vmem:[#allocation2 + $0x68] sm:$0xff] %v750
      %783 = vst [vmem:[#allocation2 + $0x70] sm:$0xff] %v751
      %784 = vst [vmem:[#allocation2 + $0x78] sm:$0xff] %v752
      %785 = vst [vmem:[#allocation2 + $0x80] sm:$0xff] %v753
      %786 = vst [vmem:[#allocation2 + $0x88] sm:$0xff] %v754
      %787 = vst [vmem:[#allocation2 + $0x90] sm:$0xff] %v755
      %788 = vst [vmem:[#allocation2 + $0x98] sm:$0xff] %v756
      %789 = vst [vmem:[#allocation2 + $0xa0] sm:$0xff] %v757
      %790 = vst [vmem:[#allocation2 + $0xa8] sm:$0xff] %v758
      %791 = vst [vmem:[#allocation2 + $0xb0] sm:$0xff] %v759
      %792 = vst [vmem:[#allocation2 + $0xb8] sm:$0xff] %v760
      %793 = vst [vmem:[#allocation2 + $0xc0] sm:$0xff] %v761
      %794 = vst [vmem:[#allocation2 + $0xc8] sm:$0xff] %v762
      %795 = vst [vmem:[#allocation2 + $0xd0] sm:$0xff] %v763
      %796 = vst [vmem:[#allocation2 + $0xd8] sm:$0xff] %v764
      %797 = vst [vmem:[#allocation2 + $0xe0] sm:$0xff] %v765
      %798 = vst [vmem:[#allocation2 + $0xe8] sm:$0xff] %v766
      %799 = vst [vmem:[#allocation2 + $0xf0] sm:$0xff] %v767
      %800 = vst [vmem:[#allocation2 + $0xf8] sm:$0xff] %v768
      // Predicated region
      $region41: #{block_forward.2} parent=35 // pred_check
        %p801 = pneg %p307
      $region42: #{block_forward.2} parent=35 // pred_check_branch
        %803 = sbr.rel (%p801) target = $region44
      $region43: #{block_forward.2} parent=35 // pred_region
        %v804 = vld [vmem:[#allocation2] sm:$0xff]
        %v805 = vld [vmem:[#allocation2 + $0x8] sm:$0xff]
        %v806 = vld [vmem:[#allocation2 + $0x10] sm:$0xff]
        %v807 = vld [vmem:[#allocation2 + $0x18] sm:$0xff]
        %v808 = vld [vmem:[#allocation2 + $0x20] sm:$0xff]
        %v809 = vld [vmem:[#allocation2 + $0x28] sm:$0xff]
        %v810 = vld [vmem:[#allocation2 + $0x30] sm:$0xff]
        %v811 = vld [vmem:[#allocation2 + $0x38] sm:$0xff]
        %v812 = vld [vmem:[#allocation2 + $0x40] sm:$0xff]
        %v813 = vld [vmem:[#allocation2 + $0x48] sm:$0xff]
        %v814 = vld [vmem:[#allocation2 + $0x50] sm:$0xff]
        %v815 = vld [vmem:[#allocation2 + $0x58] sm:$0xff]
        %v816 = vld [vmem:[#allocation2 + $0x60] sm:$0xff]
        %v817 = vld [vmem:[#allocation2 + $0x68] sm:$0xff]
        %v818 = vld [vmem:[#allocation2 + $0x70] sm:$0xff]
        %v819 = vld [vmem:[#allocation2 + $0x78] sm:$0xff]
        %v820 = vld [vmem:[#allocation2 + $0x80] sm:$0xff]
        %v821 = vld [vmem:[#allocation2 + $0x88] sm:$0xff]
        %v822 = vld [vmem:[#allocation2 + $0x90] sm:$0xff]
        %v823 = vld [vmem:[#allocation2 + $0x98] sm:$0xff]
        %v824 = vld [vmem:[#allocation2 + $0xa0] sm:$0xff]
        %v825 = vld [vmem:[#allocation2 + $0xa8] sm:$0xff]
        %v826 = vld [vmem:[#allocation2 + $0xb0] sm:$0xff]
        %v827 = vld [vmem:[#allocation2 + $0xb8] sm:$0xff]
        %v828 = vld [vmem:[#allocation2 + $0xc0] sm:$0xff]
        %v829 = vld [vmem:[#allocation2 + $0xc8] sm:$0xff]
        %v830 = vld [vmem:[#allocation2 + $0xd0] sm:$0xff]
        %v831 = vld [vmem:[#allocation2 + $0xd8] sm:$0xff]
        %v832 = vld [vmem:[#allocation2 + $0xe0] sm:$0xff]
        %v833 = vld [vmem:[#allocation2 + $0xe8] sm:$0xff]
        %v834 = vld [vmem:[#allocation2 + $0xf0] sm:$0xff]
        %v835 = vld [vmem:[#allocation2 + $0xf8] sm:$0xff]
        %v836 = vld [vmem:[%s292] sm:$0x1]
        %v837 = vlaneseq
        %v838 = vshrl.u32 %v837, 7
        %v839 = vsub.s32 0, %v838
        %v840 = vrot.slane %v836, %v839
        %v841 = vmul.f32 %v804, %v840
        %v842 = vmul.f32 %v805, %v840
        %v843 = vmul.f32 %v806, %v840
        %v844 = vmul.f32 %v807, %v840
        %v845 = vmul.f32 %v808, %v840
        %v846 = vmul.f32 %v809, %v840
        %v847 = vmul.f32 %v810, %v840
        %v848 = vmul.f32 %v811, %v840
        %v849 = vmul.f32 %v812, %v840
        %v850 = vmul.f32 %v813, %v840
        %v851 = vmul.f32 %v814, %v840
        %v852 = vmul.f32 %v815, %v840
        %v853 = vmul.f32 %v816, %v840
        %v854 = vmul.f32 %v817, %v840
        %v855 = vmul.f32 %v818, %v840
        %v856 = vmul.f32 %v819, %v840
        %v857 = vmul.f32 %v820, %v840
        %v858 = vmul.f32 %v821, %v840
        %v859 = vmul.f32 %v822, %v840
        %v860 = vmul.f32 %v823, %v840
        %v861 = vmul.f32 %v824, %v840
        %v862 = vmul.f32 %v825, %v840
        %v863 = vmul.f32 %v826, %v840
        %v864 = vmul.f32 %v827, %v840
        %v865 = vmul.f32 %v828, %v840
        %v866 = vmul.f32 %v829, %v840
        %v867 = vmul.f32 %v830, %v840
        %v868 = vmul.f32 %v831, %v840
        %v869 = vmul.f32 %v832, %v840
        %v870 = vmul.f32 %v833, %v840
        %v871 = vmul.f32 %v834, %v840
        %v872 = vmul.f32 %v835, %v840
        %v873 = vld [vmem:[%s296] sm:$0x1]
        %v874 = vlaneseq
        %v875 = vshrl.u32 %v874, 7
        %v876 = vsub.s32 0, %v875
        %v877 = vrot.slane %v873, %v876
        %v878 = vadd.f32 %v841, %v877
        %v879 = vadd.f32 %v842, %v877
        %v880 = vadd.f32 %v843, %v877
        %v881 = vadd.f32 %v844, %v877
        %v882 = vadd.f32 %v845, %v877
        %v883 = vadd.f32 %v846, %v877
        %v884 = vadd.f32 %v847, %v877
        %v885 = vadd.f32 %v848, %v877
        %v886 = vadd.f32 %v849, %v877
        %v887 = vadd.f32 %v850, %v877
        %v888 = vadd.f32 %v851, %v877
        %v889 = vadd.f32 %v852, %v877
        %v890 = vadd.f32 %v853, %v877
        %v891 = vadd.f32 %v854, %v877
        %v892 = vadd.f32 %v855, %v877
        %v893 = vadd.f32 %v856, %v877
        %v894 = vadd.f32 %v857, %v877
        %v895 = vadd.f32 %v858, %v877
        %v896 = vadd.f32 %v859, %v877
        %v897 = vadd.f32 %v860, %v877
        %v898 = vadd.f32 %v861, %v877
        %v899 = vadd.f32 %v862, %v877
        %v900 = vadd.f32 %v863, %v877
        %v901 = vadd.f32 %v864, %v877
        %v902 = vadd.f32 %v865, %v877
        %v903 = vadd.f32 %v866, %v877
        %v904 = vadd.f32 %v867, %v877
        %v905 = vadd.f32 %v868, %v877
        %v906 = vadd.f32 %v869, %v877
        %v907 = vadd.f32 %v870, %v877
        %v908 = vadd.f32 %v871, %v877
        %v909 = vadd.f32 %v872, %v877
        %v910 = vmax.f32 %v878, 0.0
        %v911 = vmax.f32 %v879, 0.0
        %v912 = vmax.f32 %v880, 0.0
        %v913 = vmax.f32 %v881, 0.0
        %v914 = vmax.f32 %v882, 0.0
        %v915 = vmax.f32 %v883, 0.0
        %v916 = vmax.f32 %v884, 0.0
        %v917 = vmax.f32 %v885, 0.0
        %v918 = vmax.f32 %v886, 0.0
        %v919 = vmax.f32 %v887, 0.0
        %v920 = vmax.f32 %v888, 0.0
        %v921 = vmax.f32 %v889, 0.0
        %v922 = vmax.f32 %v890, 0.0
        %v923 = vmax.f32 %v891, 0.0
        %v924 = vmax.f32 %v892, 0.0
        %v925 = vmax.f32 %v893, 0.0
        %v926 = vmax.f32 %v894, 0.0
        %v927 = vmax.f32 %v895, 0.0
        %v928 = vmax.f32 %v896, 0.0
        %v929 = vmax.f32 %v897, 0.0
        %v930 = vmax.f32 %v898, 0.0
        %v931 = vmax.f32 %v899, 0.0
        %v932 = vmax.f32 %v900, 0.0
        %v933 = vmax.f32 %v901, 0.0
        %v934 = vmax.f32 %v902, 0.0
        %v935 = vmax.f32 %v903, 0.0
        %v936 = vmax.f32 %v904, 0.0
        %v937 = vmax.f32 %v905, 0.0
        %v938 = vmax.f32 %v906, 0.0
        %v939 = vmax.f32 %v907, 0.0
        %v940 = vmax.f32 %v908, 0.0
        %v941 = vmax.f32 %v909, 0.0
        %v942 = vpack.c.bf16 %v911, %v910
        %v943 = vpack.c.bf16 %v913, %v912
        %v944 = vpack.c.bf16 %v915, %v914
        %v945 = vpack.c.bf16 %v917, %v916
        %v946 = vpack.c.bf16 %v919, %v918
        %v947 = vpack.c.bf16 %v921, %v920
        %v948 = vpack.c.bf16 %v923, %v922
        %v949 = vpack.c.bf16 %v925, %v924
        %v950 = vpack.c.bf16 %v927, %v926
        %v951 = vpack.c.bf16 %v929, %v928
        %v952 = vpack.c.bf16 %v931, %v930
        %v953 = vpack.c.bf16 %v933, %v932
        %v954 = vpack.c.bf16 %v935, %v934
        %v955 = vpack.c.bf16 %v937, %v936
        %v956 = vpack.c.bf16 %v939, %v938
        %v957 = vpack.c.bf16 %v941, %v940
        %v974 = vunpack.c.l.b16 %v942
        %v975 = vunpack.c.h.b16 %v942
        %v976 = vunpack.c.l.b16 %v943
        %v977 = vunpack.c.h.b16 %v943
        %v978 = vunpack.c.l.b16 %v944
        %v979 = vunpack.c.h.b16 %v944
        %v980 = vunpack.c.l.b16 %v945
        %v981 = vunpack.c.h.b16 %v945
        %v982 = vunpack.c.l.b16 %v946
        %v983 = vunpack.c.h.b16 %v946
        %v984 = vunpack.c.l.b16 %v947
        %v985 = vunpack.c.h.b16 %v947
        %v986 = vunpack.c.l.b16 %v948
        %v987 = vunpack.c.h.b16 %v948
        %v988 = vunpack.c.l.b16 %v949
        %v989 = vunpack.c.h.b16 %v949
        %v990 = vunpack.c.l.b16 %v950
        %v991 = vunpack.c.h.b16 %v950
        %v992 = vunpack.c.l.b16 %v951
        %v993 = vunpack.c.h.b16 %v951
        %v994 = vunpack.c.l.b16 %v952
        %v995 = vunpack.c.h.b16 %v952
        %v996 = vunpack.c.l.b16 %v953
        %v997 = vunpack.c.h.b16 %v953
        %v998 = vunpack.c.l.b16 %v954
        %v999 = vunpack.c.h.b16 %v954
        %v1000 = vunpack.c.l.b16 %v955
        %v1001 = vunpack.c.h.b16 %v955
        %v1002 = vunpack.c.l.b16 %v956
        %v1003 = vunpack.c.h.b16 %v956
        %v1004 = vunpack.c.l.b16 %v957
        %v1005 = vunpack.c.h.b16 %v957
        %v1006 = vpack.c.b16 %v974, %v974
        %v1007 = vpack.c.b16 %v975, %v975
        %v1008 = vpack.c.b16 %v976, %v976
        %v1009 = vpack.c.b16 %v977, %v977
        %v1010 = vpack.c.b16 %v978, %v978
        %v1011 = vpack.c.b16 %v979, %v979
        %v1012 = vpack.c.b16 %v980, %v980
        %v1013 = vpack.c.b16 %v981, %v981
        %v1014 = vpack.c.b16 %v982, %v982
        %v1015 = vpack.c.b16 %v983, %v983
        %v1016 = vpack.c.b16 %v984, %v984
        %v1017 = vpack.c.b16 %v985, %v985
        %v1018 = vpack.c.b16 %v986, %v986
        %v1019 = vpack.c.b16 %v987, %v987
        %v1020 = vpack.c.b16 %v988, %v988
        %v1021 = vpack.c.b16 %v989, %v989
        %v1022 = vpack.c.b16 %v990, %v990
        %v1023 = vpack.c.b16 %v991, %v991
        %v1024 = vpack.c.b16 %v992, %v992
        %v1025 = vpack.c.b16 %v993, %v993
        %v1026 = vpack.c.b16 %v994, %v994
        %v1027 = vpack.c.b16 %v995, %v995
        %v1028 = vpack.c.b16 %v996, %v996
        %v1029 = vpack.c.b16 %v997, %v997
        %v1030 = vpack.c.b16 %v998, %v998
        %v1031 = vpack.c.b16 %v999, %v999
        %v1032 = vpack.c.b16 %v1000, %v1000
        %v1033 = vpack.c.b16 %v1001, %v1001
        %v1034 = vpack.c.b16 %v1002, %v1002
        %v1035 = vpack.c.b16 %v1003, %v1003
        %v1036 = vpack.c.b16 %v1004, %v1004
        %v1037 = vpack.c.b16 %v1005, %v1005
        %1070 = vst [vmem:[%s304] sm:$0xf] %v1006
        %1071 = vst [vmem:[%s304 + $0x4] sm:$0xf] %v1007
        %1072 = vst [vmem:[%s304 + $0x8] sm:$0xf] %v1008
        %1073 = vst [vmem:[%s304 + $0xc] sm:$0xf] %v1009
        %1074 = vst [vmem:[%s304 + $0x10] sm:$0xf] %v1010
        %1075 = vst [vmem:[%s304 + $0x14] sm:$0xf] %v1011
        %1076 = vst [vmem:[%s304 + $0x18] sm:$0xf] %v1012
        %1077 = vst [vmem:[%s304 + $0x1c] sm:$0xf] %v1013
        %1078 = vst [vmem:[%s304 + $0x20] sm:$0xf] %v1014
        %1079 = vst [vmem:[%s304 + $0x24] sm:$0xf] %v1015
        %1080 = vst [vmem:[%s304 + $0x28] sm:$0xf] %v1016
        %1081 = vst [vmem:[%s304 + $0x2c] sm:$0xf] %v1017
        %1082 = vst [vmem:[%s304 + $0x30] sm:$0xf] %v1018
        %1083 = vst [vmem:[%s304 + $0x34] sm:$0xf] %v1019
        %1084 = vst [vmem:[%s304 + $0x38] sm:$0xf] %v1020
        %1085 = vst [vmem:[%s304 + $0x3c] sm:$0xf] %v1021
        %1086 = vst [vmem:[%s304 + $0x40] sm:$0xf] %v1022
        %1087 = vst [vmem:[%s304 + $0x44] sm:$0xf] %v1023
        %1088 = vst [vmem:[%s304 + $0x48] sm:$0xf] %v1024
        %1089 = vst [vmem:[%s304 + $0x4c] sm:$0xf] %v1025
        %1090 = vst [vmem:[%s304 + $0x50] sm:$0xf] %v1026
        %1091 = vst [vmem:[%s304 + $0x54] sm:$0xf] %v1027
        %1092 = vst [vmem:[%s304 + $0x58] sm:$0xf] %v1028
        %1093 = vst [vmem:[%s304 + $0x5c] sm:$0xf] %v1029
        %1094 = vst [vmem:[%s304 + $0x60] sm:$0xf] %v1030
        %1095 = vst [vmem:[%s304 + $0x64] sm:$0xf] %v1031
        %1096 = vst [vmem:[%s304 + $0x68] sm:$0xf] %v1032
        %1097 = vst [vmem:[%s304 + $0x6c] sm:$0xf] %v1033
        %1098 = vst [vmem:[%s304 + $0x70] sm:$0xf] %v1034
        %1099 = vst [vmem:[%s304 + $0x74] sm:$0xf] %v1035
        %1100 = vst [vmem:[%s304 + $0x78] sm:$0xf] %v1036
        %1101 = vst [vmem:[%s304 + $0x7c] sm:$0xf] %v1037
      $region44: #{block_forward.2} parent=35 // pred_fallthru
        _
      %s1102 = smul.u32 32, %s20
      %p1103 = scmp.lt.s32.totalorder %s1102, 63
      %s1104 = scalar_select %p1103, %s1102, 63
      %p1105 = scmp.lt.s32.totalorder %s21, 0
      %s1106 = scalar_select %p1105, %s21, 0
      %s1107 = sadd.s32 %s1106, %s1104
      %s1108 = smul.addr %s1107, 4
      %s1109 = scalar_lea.vmem %s4, %s1108
      // Predicated region
      $region45: #{block_forward.2} parent=35 // pred_check
        %p1110 = pneg %p162
      $region46: #{block_forward.2} parent=35 // pred_check_branch
        %1112 = sbr.rel (%p1110) target = $region48
      $region47: #{block_forward.2} parent=35 // pred_region
        %s1113 = smul.u32 32, %s20
      $region48: #{block_forward.2} parent=35 // pred_fallthru
        _
    $region36: #{block_forward.2} parent=5 // pred_fallthru
      _
    %p1114 = scmp.le.s32.totalorder 2, %s10
    // Predicated region
    $region49: #{block_forward.2} parent=5 // pred_check
      %p1115 = pneg %p1114
    $region50: #{block_forward.2} parent=5 // pred_check_branch
      %1117 = sbr.rel (%p1115) target = $region52
    $region51: #{block_forward.2} parent=5 // pred_region
      %s1118 = ssub.s32 %s10, 2
      // Predicated region
      $region53: #{block_forward.2} parent=51 // pred_check
        %p1119 = pneg %p168
      $region54: #{block_forward.2} parent=51 // pred_check_branch
        %1121 = sbr.rel (%p1119) target = $region56
      $region55: #{block_forward.2} parent=51 // pred_region
        %s1122 = smul.u32 32, %s23
        %p1123 = scmp.lt.s32.totalorder %s1122, 63
        %s1124 = scalar_select %p1123, %s1122, 63
        %p1125 = scmp.lt.s32.totalorder %s24, 0
        %s1126 = scalar_select %p1125, %s24, 0
        %s1127 = sadd.s32 %s1126, %s1124
        %s1128 = smul.addr %s1127, 4
        %s1129 = scalar_lea.vmem %s4, %s1128
      $region56: #{block_forward.2} parent=51 // pred_fallthru
        _
    $region52: #{block_forward.2} parent=5 // pred_fallthru
      _
  $region6: #{block_forward.2} parent=0 // loop_footer
    %s14 = sadd.s32 1, %s10
  $region7: #{block_forward.2} parent=0 // loop_footer_branch
    %9 = sbr.rel target = $region3
  $region8: #{block_forward.2} parent=0 // loop_exit
    _

// kernel: block_forward.3
$region0: #{block_forward.3}
  #allocation0 [shape = 'u32[]', space=smem, size = 0x4, offset = 0x4, fixed_abs, tag = 'smem constant byte address 0x4 - core index']
  #allocation1 [shape = 'u32[144,128]{1,0:T(1,128)}', space=vmem, size = 0x12000, scoped, tag = 'internal scratch']
  #allocation2 [shape = 'f32[256,128]{1,0:T(8,128)}', space=vmem, size = 0x20000, scoped, tag = 'scratch operand']
  %s0 = inlined_call_operand.vmem [shape: bf16[512,16], index: 0, kind: input, shape index: {}]
  %s1 = inlined_call_operand.vmem [shape: bf16[16,128], index: 1, kind: input, shape index: {}]
  %s2 = inlined_call_operand.vmem [shape: f32[8,128], index: 2, kind: input, shape index: {}]
  %s3 = inlined_call_operand.vmem [shape: f32[8,128], index: 3, kind: input, shape index: {}]
  %s4 = inlined_call_operand.vmem [shape: f32[512,128], index: 4, kind: input, shape index: {}]
  %s5 = inlined_call_operand.vmem [shape: f32[512,128], index: 5, kind: output, shape index: {}]
  %s6 = sld [smem:[#allocation0]]
  $region61: #{block_forward.3} parent=0
    _
  %s8 = ssub.s32 1, %s6
  %s9 = scalar_select 0, %s8, %s6
  loop: start=0, step=1, limit=4
  $region2: #{block_forward.3} parent=0 // loop_pre_header
    _
  $region3: #{block_forward.3} parent=0 // loop_header
    %s11 = sphi 0, %s15
    %p12 = scmp.ge.s32.totalorder %s11, 4
    %s18 = sphi 0, %s37
    %s19 = sphi 0, %s33
    %s20 = sphi 0, %s29
    %s21 = sphi 0, %s18
    %s22 = sphi 0, %s19
    %s23 = sphi 0, %s20
    %s24 = sphi 0, %s21
    %s25 = sphi 0, %s22
    %s26 = sphi 0, %s23
    %s42 = sphi 0, %s44
    %s45 = sphi 0, %s42
    %s46 = sphi 0, %s45
    %s62 = sphi 0, %s46
    %s70 = sphi 0, %s72
    %s73 = sphi 0, %s70
    %s74 = sphi 0, %s73
    %s90 = sphi 0, %s74
    %s96 = sphi 0, %s98
    %s99 = sphi 0, %s96
    %s100 = sphi 0, %s99
    %s116 = sphi 0, %s100
    %s122 = sphi 0, %s124
    %s125 = sphi 0, %s122
    %s126 = sphi 0, %s125
    %s142 = sphi 0, %s126
    %s150 = sphi 0, %s152
    %s153 = sphi 0, %s150
    %s154 = sphi 0, %s153
    %s170 = sphi 0, %s154
    %s178 = sphi 0, %s180
    %s181 = sphi 0, %s178
    %s182 = sphi 0, %s181
    %s198 = sphi 0, %s182
  $region4: #{block_forward.3} parent=0 // loop_header_branch
    %14 = sbr.rel (%p12) target = $region8
  $region5: #{block_forward.3} parent=0 // loop_body
    %s16 = ssub.s32 %s11, 1
    %s17 = ssub.s32 %s11, 2
    %s27 = sadd.s32 1, %s20
    %p28 = scmp.ge.s32.totalorder %s27, 1
    %s29 = scalar_select %p28, 0, %s27
    %s30 = sadd.s32 1, %s19
    %s31 = scalar_select %p28, %s30, %s19
    %p32 = scmp.ge.s32.totalorder %s31, 1
    %s33 = scalar_select %p32, 0, %s31
    %s34 = sadd.s32 1, %s18
    %s35 = scalar_select %p32, %s34, %s18
    %p36 = scmp.ge.s32.totalorder %s35, 2
    %s37 = scalar_select %p36, 0, %s35
    %s38 = ssub.s32 %s18, %s37
    %s39 = ssub.s32 %s20, %s29
    %s40 = sor.u32 %s38, %s39
    %p41 = scmp.eq.s32.totalorder %s40, 0
    %s43 = sadd.s32 %s42, 1
    %s44 = scalar_select %p41, %s42, %s43
    %p47 = pneg %p41
    %p48 = scmp.eq.s32.totalorder %s11, 1
    %p49 = por %p47, %p48
    %p50 = scmp.ne.s32.totalorder %s42, %s45
    %p51 = scmp.eq.s32.totalorder %s11, 0
    %p52 = por %p50, %p51
    %p53 = scmp.ne.s32.totalorder %s42, %s45
    %p54 = scmp.eq.s32.totalorder %s16, 1
    %p55 = por %p53, %p54
    %p56 = scmp.ne.s32.totalorder %s45, %s46
    %p57 = scmp.eq.s32.totalorder %s16, 0
    %p58 = por %p56, %p57
    %p59 = scmp.ne.s32.totalorder %s45, %s46
    %p60 = scmp.eq.s32.totalorder %s17, 1
    %p61 = por %p59, %p60
    %p63 = scmp.ne.s32.totalorder %s46, %s62
    %p64 = scmp.eq.s32.totalorder %s17, 0
    %p65 = por %p63, %p64
    %s66 = ssub.s32 %s20, %s29
    %s67 = ssub.s32 %s19, %s33
    %s68 = sor.u32 %s66, %s67
    %p69 = scmp.eq.s32.totalorder %s68, 0
    %s71 = sadd.s32 %s70, 1
    %s72 = scalar_select %p69, %s70, %s71
    %p75 = pneg %p69
    %p76 = scmp.eq.s32.totalorder %s11, 1
    %p77 = por %p75, %p76
    %p78 = scmp.ne.s32.totalorder %s70, %s73
    %p79 = scmp.eq.s32.totalorder %s11, 0
    %p80 = por %p78, %p79
    %p81 = scmp.ne.s32.totalorder %s70, %s73
    %p82 = scmp.eq.s32.totalorder %s16, 1
    %p83 = por %p81, %p82
    %p84 = scmp.ne.s32.totalorder %s73, %s74
    %p85 = scmp.eq.s32.totalorder %s16, 0
    %p86 = por %p84, %p85
    %p87 = scmp.ne.s32.totalorder %s73, %s74
    %p88 = scmp.eq.s32.totalorder %s17, 1
    %p89 = por %p87, %p88
    %p91 = scmp.ne.s32.totalorder %s74, %s90
    %p92 = scmp.eq.s32.totalorder %s17, 0
    %p93 = por %p91, %p92
    %s94 = ssub.s32 %s19, %s33
    %p95 = scmp.eq.s32.totalorder %s94, 0
    %s97 = sadd.s32 %s96, 1
    %s98 = scalar_select %p95, %s96, %s97
    %p101 = pneg %p95
    %p102 = scmp.eq.s32.totalorder %s11, 1
    %p103 = por %p101, %p102
    %p104 = scmp.ne.s32.totalorder %s96, %s99
    %p105 = scmp.eq.s32.totalorder %s11, 0
    %p106 = por %p104, %p105
    %p107 = scmp.ne.s32.totalorder %s96, %s99
    %p108 = scmp.eq.s32.totalorder %s16, 1
    %p109 = por %p107, %p108
    %p110 = scmp.ne.s32.totalorder %s99, %s100
    %p111 = scmp.eq.s32.totalorder %s16, 0
    %p112 = por %p110, %p111
    %p113 = scmp.ne.s32.totalorder %s99, %s100
    %p114 = scmp.eq.s32.totalorder %s17, 1
    %p115 = por %p113, %p114
    %p117 = scmp.ne.s32.totalorder %s100, %s116
    %p118 = scmp.eq.s32.totalorder %s17, 0
    %p119 = por %p117, %p118
    %s120 = ssub.s32 %s19, %s33
    %p121 = scmp.eq.s32.totalorder %s120, 0
    %s123 = sadd.s32 %s122, 1
    %s124 = scalar_select %p121, %s122, %s123
    %p127 = pneg %p121
    %p128 = scmp.eq.s32.totalorder %s11, 1
    %p129 = por %p127, %p128
    %p130 = scmp.ne.s32.totalorder %s122, %s125
    %p131 = scmp.eq.s32.totalorder %s11, 0
    %p132 = por %p130, %p131
    %p133 = scmp.ne.s32.totalorder %s122, %s125
    %p134 = scmp.eq.s32.totalorder %s16, 1
    %p135 = por %p133, %p134
    %p136 = scmp.ne.s32.totalorder %s125, %s126
    %p137 = scmp.eq.s32.totalorder %s16, 0
    %p138 = por %p136, %p137
    %p139 = scmp.ne.s32.totalorder %s125, %s126
    %p140 = scmp.eq.s32.totalorder %s17, 1
    %p141 = por %p139, %p140
    %p143 = scmp.ne.s32.totalorder %s126, %s142
    %p144 = scmp.eq.s32.totalorder %s17, 0
    %p145 = por %p143, %p144
    %s146 = ssub.s32 %s18, %s37
    %s147 = ssub.s32 %s19, %s33
    %s148 = sor.u32 %s146, %s147
    %p149 = scmp.eq.s32.totalorder %s148, 0
    %s151 = sadd.s32 %s150, 1
    %s152 = scalar_select %p149, %s150, %s151
    %p155 = pneg %p149
    %p156 = scmp.eq.s32.totalorder %s11, 1
    %p157 = por %p155, %p156
    %p158 = scmp.ne.s32.totalorder %s150, %s153
    %p159 = scmp.eq.s32.totalorder %s11, 0
    %p160 = por %p158, %p159
    %p161 = scmp.ne.s32.totalorder %s150, %s153
    %p162 = scmp.eq.s32.totalorder %s16, 1
    %p163 = por %p161, %p162
    %p164 = scmp.ne.s32.totalorder %s153, %s154
    %p165 = scmp.eq.s32.totalorder %s16, 0
    %p166 = por %p164, %p165
    %p167 = scmp.ne.s32.totalorder %s153, %s154
    %p168 = scmp.eq.s32.totalorder %s17, 1
    %p169 = por %p167, %p168
    %p171 = scmp.ne.s32.totalorder %s154, %s170
    %p172 = scmp.eq.s32.totalorder %s17, 0
    %p173 = por %p171, %p172
    %s174 = ssub.s32 %s18, %s37
    %s175 = ssub.s32 %s19, %s33
    %s176 = sor.u32 %s174, %s175
    %p177 = scmp.eq.s32.totalorder %s176, 0
    %s179 = sadd.s32 %s178, 1
    %s180 = scalar_select %p177, %s178, %s179
    %p183 = pneg %p177
    %p184 = scmp.eq.s32.totalorder %s11, 1
    %p185 = por %p183, %p184
    %p186 = scmp.ne.s32.totalorder %s178, %s181
    %p187 = scmp.eq.s32.totalorder %s11, 0
    %p188 = por %p186, %p187
    %p189 = scmp.ne.s32.totalorder %s178, %s181
    %p190 = scmp.eq.s32.totalorder %s16, 1
    %p191 = por %p189, %p190
    %p192 = scmp.ne.s32.totalorder %s181, %s182
    %p193 = scmp.eq.s32.totalorder %s16, 0
    %p194 = por %p192, %p193
    %p195 = scmp.ne.s32.totalorder %s181, %s182
    %p196 = scmp.eq.s32.totalorder %s17, 1
    %p197 = por %p195, %p196
    %p199 = scmp.ne.s32.totalorder %s182, %s198
    %p200 = scmp.eq.s32.totalorder %s17, 0
    %p201 = por %p199, %p200
    %p202 = scmp.le.s32.totalorder 1, %s11
    %p203 = scmp.lt.s32.totalorder %s11, 3
    %p204 = pnand %p202, %p203
    %p205 = pneg %p204
    // Predicated region
    $region9: #{block_forward.3} parent=5 // pred_check
      _
    $region10: #{block_forward.3} parent=5 // pred_check_branch
      %207 = sbr.rel (%p204) target = $region12
    $region11: #{block_forward.3} parent=5 // pred_region
      %s208 = ssub.s32 %s11, 1
      // Predicated region
      $region13: #{block_forward.3} parent=11 // pred_check
        %p209 = pneg %p86
      $region14: #{block_forward.3} parent=11 // pred_check_branch
        %211 = sbr.rel (%p209) target = $region16
      $region15: #{block_forward.3} parent=11 // pred_region
        %s212 = smul.u32 2, %s23
        %p213 = scmp.lt.s32.totalorder %s212, 1
        %s214 = scalar_select %p213, %s212, 1
        %p215 = scmp.lt.s32.totalorder %s22, 0
        %s216 = scalar_select %p215, %s22, 0
        %s217 = sadd.s32 %s216, %s214
        %s218 = smul.addr %s217, 4
        %s219 = scalar_lea.vmem %s1, %s218
        %s220 = smul.u32 2, %s23
      $region16: #{block_forward.3} parent=11 // pred_fallthru
        _
      // Predicated region
      $region17: #{block_forward.3} parent=11 // pred_check
        %p221 = pneg %p112
      $region18: #{block_forward.3} parent=11 // pred_check_branch
        %223 = sbr.rel (%p221) target = $region20
      $region19: #{block_forward.3} parent=11 // pred_region
        %p224 = scmp.lt.s32.totalorder %s22, 0
        %s225 = scalar_select %p224, %s22, 0
        %s226 = smul.addr %s225, 8
        %s227 = scalar_lea.vmem %s2, %s226
      $region20: #{block_forward.3} parent=11 // pred_fallthru
        _
      // Predicated region
      $region21: #{block_forward.3} parent=11 // pred_check
        %p228 = pneg %p138
      $region22: #{block_forward.3} parent=11 // pred_check_branch
        %230 = sbr.rel (%p228) target = $region24
      $region23: #{block_forward.3} parent=11 // pred_region
        %p231 = scmp.lt.s32.totalorder %s22, 0
        %s232 = scalar_select %p231, %s22, 0
        %s233 = smul.addr %s232, 8
        %s234 = scalar_lea.vmem %s3, %s233
      $region24: #{block_forward.3} parent=11 // pred_fallthru
        _
    $region12: #{block_forward.3} parent=5 // pred_fallthru
      _
    %p235 = scmp.lt.s32.totalorder %s11, 2
    // Predicated region
    $region25: #{block_forward.3} parent=5 // pred_check
      %p236 = pneg %p235
    $region26: #{block_forward.3} parent=5 // pred_check_branch
      %238 = sbr.rel (%p236) target = $region28
    $region27: #{block_forward.3} parent=5 // pred_region
      // Predicated region
      $region29: #{block_forward.3} parent=27 // pred_check
        %p239 = pneg %p52
      $region30: #{block_forward.3} parent=27 // pred_check_branch
        %241 = sbr.rel (%p239) target = $region32
      $region31: #{block_forward.3} parent=27 // pred_region
        %s242 = smul.u32 32, %s18
        %p243 = scmp.lt.s32.totalorder %s242, 63
        %s244 = scalar_select %p243, %s242, 63
        %p245 = scmp.lt.s32.totalorder %s20, 0
        %s246 = scalar_select %p245, %s20, 0
        %s247 = sadd.s32 %s246, %s244
        %s248 = smul.addr %s247, 4
        %s249 = scalar_lea.vmem %s0, %s248
        %s250 = smul.u32 32, %s18
      $region32: #{block_forward.3} parent=27 // pred_fallthru
        _
      // Predicated region
      $region33: #{block_forward.3} parent=27 // pred_check
        %p251 = pneg %p160
      $region34: #{block_forward.3} parent=27 // pred_check_branch
        %253 = sbr.rel (%p251) target = $region36
      $region35: #{block_forward.3} parent=27 // pred_region
        %s254 = smul.u32 32, %s18
        %p255 = scmp.lt.s32.totalorder %s254, 63
        %s256 = scalar_select %p255, %s254, 63
        %p257 = scmp.lt.s32.totalorder %s19, 0
        %s258 = scalar_select %p257, %s19, 0
        %s259 = sadd.s32 %s258, %s256
        %s260 = smul.addr %s259, 8
        %s261 = scalar_lea.vmem %s4, %s260
        %s262 = smul.u32 32, %s18
      $region36: #{block_forward.3} parent=27 // pred_fallthru
        _
    $region28: #{block_forward.3} parent=5 // pred_fallthru
      _
    %p263 = scmp.le.s32.totalorder 1, %s11
    %p264 = scmp.lt.s32.totalorder %s11, 3
    %p265 = pnand %p263, %p264
    %p266 = pneg %p265
    // Predicated region
    $region37: #{block_forward.3} parent=5 // pred_check
      _
    $region38: #{block_forward.3} parent=5 // pred_check_branch
      %268 = sbr.rel (%p265) target = $region40
    $region39: #{block_forward.3} parent=5 // pred_region
      %s269 = ssub.s32 %s11, 1
      %s270 = smul.u32 32, %s21
      %p271 = scmp.lt.s32.totalorder %s270, 63
      %s272 = scalar_select %p271, %s270, 63
      %p273 = scmp.lt.s32.totalorder %s23, 0
      %s274 = scalar_select %p273, %s23, 0
      %s275 = sadd.s32 %s274, %s272
      %s276 = smul.addr %s275, 4
      %s277 = scalar_lea.vmem %s0, %s276
      %p278 = pneg %p58
      %p279 = pneg %p55
      %s280 = smul.u32 2, %s23
      %p281 = scmp.lt.s32.totalorder %s280, 1
      %s282 = scalar_select %p281, %s280, 1
      %p283 = scmp.lt.s32.totalorder %s22, 0
      %s284 = scalar_select %p283, %s22, 0
      %s285 = sadd.s32 %s284, %s282
      %s286 = smul.addr %s285, 4
      %s287 = scalar_lea.vmem %s1, %s286
      %p288 = pneg %p86
      %p289 = pneg %p83
      %p290 = scmp.lt.s32.totalorder %s22, 0
      %s291 = scalar_select %p290, %s22, 0
      %s292 = smul.addr %s291, 8
      %s293 = scalar_lea.vmem %s2, %s292
      %p294 = pneg %p112
      %p295 = pneg %p109
      %p296 = scmp.lt.s32.totalorder %s22, 0
      %s297 = scalar_select %p296, %s22, 0
      %s298 = smul.addr %s297, 8
      %s299 = scalar_lea.vmem %s3, %s298
      %p300 = pneg %p138
      %p301 = pneg %p135
      %s302 = smul.u32 32, %s21
      %p303 = scmp.lt.s32.totalorder %s302, 63
      %s304 = scalar_select %p303, %s302, 63
      %p305 = scmp.lt.s32.totalorder %s22, 0
      %s306 = scalar_select %p305, %s22, 0
      %s307 = sadd.s32 %s306, %s304
      %s308 = smul.addr %s307, 8
      %s309 = scalar_lea.vmem %s4, %s308
      %p310 = pneg %p166
      %p311 = pneg %p163
      %p312 = pneg %p194
      %p313 = pneg %p191
      %s314 = smul.u32 32, %s21
      %p315 = scmp.lt.s32.totalorder %s314, 63
      %s316 = scalar_select %p315, %s314, 63
      %p317 = scmp.lt.s32.totalorder %s22, 0
      %s318 = scalar_select %p317, %s22, 0
      %s319 = sadd.s32 %s318, %s316
      %s320 = smul.addr %s319, 8
      %s321 = scalar_lea.vmem %s5, %s320
      %s322 = smul.u32 32, %s21
      %p323 = scmp.lt.s32.totalorder %s322, 63
      %s324 = scalar_select %p323, %s322, 63
      %p325 = scmp.lt.s32.totalorder %s23, 0
      %s326 = scalar_select %p325, %s23, 0
      %s327 = sadd.s32 %s326, %s324
      %s328 = smul.addr %s327, 4
      %s329 = scalar_lea.vmem %s0, %s328
      %s330 = smul.u32 32, %s21
      %s331 = smul.u32 2, %s23
      %p332 = scmp.lt.s32.totalorder %s331, 1
      %s333 = scalar_select %p332, %s331, 1
      %p334 = scmp.lt.s32.totalorder %s22, 0
      %s335 = scalar_select %p334, %s22, 0
      %s336 = sadd.s32 %s335, %s333
      %s337 = smul.addr %s336, 4
      %s338 = scalar_lea.vmem %s1, %s337
      %s339 = smul.u32 2, %s23
      %p340 = scmp.lt.s32.totalorder %s22, 0
      %s341 = scalar_select %p340, %s22, 0
      %s342 = smul.addr %s341, 8
      %s343 = scalar_lea.vmem %s2, %s342
      %p344 = scmp.lt.s32.totalorder %s22, 0
      %s345 = scalar_select %p344, %s22, 0
      %s346 = smul.addr %s345, 8
      %s347 = scalar_lea.vmem %s3, %s346
      %s348 = smul.u32 32, %s21
      %p349 = scmp.lt.s32.totalorder %s348, 63
      %s350 = scalar_select %p349, %s348, 63
      %p351 = scmp.lt.s32.totalorder %s22, 0
      %s352 = scalar_select %p351, %s22, 0
      %s353 = sadd.s32 %s352, %s350
      %s354 = smul.addr %s353, 8
      %s355 = scalar_lea.vmem %s4, %s354
      %s356 = smul.u32 32, %s21
      %s357 = smul.u32 32, %s21
      %p358 = scmp.lt.s32.totalorder %s357, 63
      %s359 = scalar_select %p358, %s357, 63
      %p360 = scmp.lt.s32.totalorder %s22, 0
      %s361 = scalar_select %p360, %s22, 0
      %s362 = sadd.s32 %s361, %s359
      %s363 = smul.addr %s362, 8
      %s364 = scalar_lea.vmem %s5, %s363
      %s365 = smul.u32 32, %s21
      %p367 = scmp.eq.s32.totalorder %s23, 0
      // Predicated region
      $region41: #{block_forward.3} parent=39 // pred_check
        %p368 = pneg %p367
      $region42: #{block_forward.3} parent=39 // pred_check_branch
        %370 = sbr.rel (%p368) target = $region44
      $region43: #{block_forward.3} parent=39 // pred_region
        %371 = vst [vmem:[#allocation2] sm:$0xff] 0.0
        %372 = vst [vmem:[#allocation2 + $0x8] sm:$0xff] 0.0
        %373 = vst [vmem:[#allocation2 + $0x10] sm:$0xff] 0.0
        %374 = vst [vmem:[#allocation2 + $0x18] sm:$0xff] 0.0
        %375 = vst [vmem:[#allocation2 + $0x20] sm:$0xff] 0.0
        %376 = vst [vmem:[#allocation2 + $0x28] sm:$0xff] 0.0
        %377 = vst [vmem:[#allocation2 + $0x30] sm:$0xff] 0.0
        %378 = vst [vmem:[#allocation2 + $0x38] sm:$0xff] 0.0
        %379 = vst [vmem:[#allocation2 + $0x40] sm:$0xff] 0.0
        %380 = vst [vmem:[#allocation2 + $0x48] sm:$0xff] 0.0
        %381 = vst [vmem:[#allocation2 + $0x50] sm:$0xff] 0.0
        %382 = vst [vmem:[#allocation2 + $0x58] sm:$0xff] 0.0
        %383 = vst [vmem:[#allocation2 + $0x60] sm:$0xff] 0.0
        %384 = vst [vmem:[#allocation2 + $0x68] sm:$0xff] 0.0
        %385 = vst [vmem:[#allocation2 + $0x70] sm:$0xff] 0.0
        %386 = vst [vmem:[#allocation2 + $0x78] sm:$0xff] 0.0
        %387 = vst [vmem:[#allocation2 + $0x80] sm:$0xff] 0.0
        %388 = vst [vmem:[#allocation2 + $0x88] sm:$0xff] 0.0
        %389 = vst [vmem:[#allocation2 + $0x90] sm:$0xff] 0.0
        %390 = vst [vmem:[#allocation2 + $0x98] sm:$0xff] 0.0
        %391 = vst [vmem:[#allocation2 + $0xa0] sm:$0xff] 0.0
        %392 = vst [vmem:[#allocation2 + $0xa8] sm:$0xff] 0.0
        %393 = vst [vmem:[#allocation2 + $0xb0] sm:$0xff] 0.0
        %394 = vst [vmem:[#allocation2 + $0xb8] sm:$0xff] 0.0
        %395 = vst [vmem:[#allocation2 + $0xc0] sm:$0xff] 0.0
        %396 = vst [vmem:[#allocation2 + $0xc8] sm:$0xff] 0.0
        %397 = vst [vmem:[#allocation2 + $0xd0] sm:$0xff] 0.0
        %398 = vst [vmem:[#allocation2 + $0xd8] sm:$0xff] 0.0
        %399 = vst [vmem:[#allocation2 + $0xe0] sm:$0xff] 0.0
        %400 = vst [vmem:[#allocation2 + $0xe8] sm:$0xff] 0.0
        %401 = vst [vmem:[#allocation2 + $0xf0] sm:$0xff] 0.0
        %402 = vst [vmem:[#allocation2 + $0xf8] sm:$0xff] 0.0
      $region44: #{block_forward.3} parent=39 // pred_fallthru
        _
      %v403 = vld [vmem:[#allocation2] sm:$0xff]
      %v404 = vld [vmem:[#allocation2 + $0x8] sm:$0xff]
      %v405 = vld [vmem:[#allocation2 + $0x10] sm:$0xff]
      %v406 = vld [vmem:[#allocation2 + $0x18] sm:$0xff]
      %v407 = vld [vmem:[#allocation2 + $0x20] sm:$0xff]
      %v408 = vld [vmem:[#allocation2 + $0x28] sm:$0xff]
      %v409 = vld [vmem:[#allocation2 + $0x30] sm:$0xff]
      %v410 = vld [vmem:[#allocation2 + $0x38] sm:$0xff]
      %v411 = vld [vmem:[#allocation2 + $0x40] sm:$0xff]
      %v412 = vld [vmem:[#allocation2 + $0x48] sm:$0xff]
      %v413 = vld [vmem:[#allocation2 + $0x50] sm:$0xff]
      %v414 = vld [vmem:[#allocation2 + $0x58] sm:$0xff]
      %v415 = vld [vmem:[#allocation2 + $0x60] sm:$0xff]
      %v416 = vld [vmem:[#allocation2 + $0x68] sm:$0xff]
      %v417 = vld [vmem:[#allocation2 + $0x70] sm:$0xff]
      %v418 = vld [vmem:[#allocation2 + $0x78] sm:$0xff]
      %v419 = vld [vmem:[#allocation2 + $0x80] sm:$0xff]
      %v420 = vld [vmem:[#allocation2 + $0x88] sm:$0xff]
      %v421 = vld [vmem:[#allocation2 + $0x90] sm:$0xff]
      %v422 = vld [vmem:[#allocation2 + $0x98] sm:$0xff]
      %v423 = vld [vmem:[#allocation2 + $0xa0] sm:$0xff]
      %v424 = vld [vmem:[#allocation2 + $0xa8] sm:$0xff]
      %v425 = vld [vmem:[#allocation2 + $0xb0] sm:$0xff]
      %v426 = vld [vmem:[#allocation2 + $0xb8] sm:$0xff]
      %v427 = vld [vmem:[#allocation2 + $0xc0] sm:$0xff]
      %v428 = vld [vmem:[#allocation2 + $0xc8] sm:$0xff]
      %v429 = vld [vmem:[#allocation2 + $0xd0] sm:$0xff]
      %v430 = vld [vmem:[#allocation2 + $0xd8] sm:$0xff]
      %v431 = vld [vmem:[#allocation2 + $0xe0] sm:$0xff]
      %v432 = vld [vmem:[#allocation2 + $0xe8] sm:$0xff]
      %v433 = vld [vmem:[#allocation2 + $0xf0] sm:$0xff]
      %v434 = vld [vmem:[#allocation2 + $0xf8] sm:$0xff]
      %v435 = vld [vmem:[%s329] sm:$0xf]
      %v436 = vld [vmem:[%s329 + $0x4] sm:$0xf]
      %v437 = vld [vmem:[%s329 + $0x8] sm:$0xf]
      %v438 = vld [vmem:[%s329 + $0xc] sm:$0xf]
      %v439 = vld [vmem:[%s329 + $0x10] sm:$0xf]
      %v440 = vld [vmem:[%s329 + $0x14] sm:$0xf]
      %v441 = vld [vmem:[%s329 + $0x18] sm:$0xf]
      %v442 = vld [vmem:[%s329 + $0x1c] sm:$0xf]
      %v443 = vld [vmem:[%s329 + $0x20] sm:$0xf]
      %v444 = vld [vmem:[%s329 + $0x24] sm:$0xf]
      %v445 = vld [vmem:[%s329 + $0x28] sm:$0xf]
      %v446 = vld [vmem:[%s329 + $0x2c] sm:$0xf]
      %v447 = vld [vmem:[%s329 + $0x30] sm:$0xf]
      %v448 = vld [vmem:[%s329 + $0x34] sm:$0xf]
      %v449 = vld [vmem:[%s329 + $0x38] sm:$0xf]
      %v450 = vld [vmem:[%s329 + $0x3c] sm:$0xf]
      %v451 = vld [vmem:[%s329 + $0x40] sm:$0xf]
      %v452 = vld [vmem:[%s329 + $0x44] sm:$0xf]
      %v453 = vld [vmem:[%s329 + $0x48] sm:$0xf]
      %v454 = vld [vmem:[%s329 + $0x4c] sm:$0xf]
      %v455 = vld [vmem:[%s329 + $0x50] sm:$0xf]
      %v456 = vld [vmem:[%s329 + $0x54] sm:$0xf]
      %v457 = vld [vmem:[%s329 + $0x58] sm:$0xf]
      %v458 = vld [vmem:[%s329 + $0x5c] sm:$0xf]
      %v459 = vld [vmem:[%s329 + $0x60] sm:$0xf]
      %v460 = vld [vmem:[%s329 + $0x64] sm:$0xf]
      %v461 = vld [vmem:[%s329 + $0x68] sm:$0xf]
      %v462 = vld [vmem:[%s329 + $0x6c] sm:$0xf]
      %v463 = vld [vmem:[%s329 + $0x70] sm:$0xf]
      %v464 = vld [vmem:[%s329 + $0x74] sm:$0xf]
      %v465 = vld [vmem:[%s329 + $0x78] sm:$0xf]
      %v466 = vld [vmem:[%s329 + $0x7c] sm:$0xf]
      %v467 = vld [vmem:[%s338] sm:$0xf]
      %v468 = vld [vmem:[%s338 + $0x4] sm:$0xf]
      %v501 = vunpack.c.l.b16 %v435
      %v502 = vunpack.c.l.b16 %v436
      %v503 = vunpack.c.l.b16 %v437
      %v504 = vunpack.c.l.b16 %v438
      %v505 = vunpack.c.l.b16 %v439
      %v506 = vunpack.c.l.b16 %v440
      %v507 = vunpack.c.l.b16 %v441
      %v508 = vunpack.c.l.b16 %v442
      %v509 = vunpack.c.l.b16 %v443
      %v510 = vunpack.c.l.b16 %v444
      %v511 = vunpack.c.l.b16 %v445
      %v512 = vunpack.c.l.b16 %v446
      %v513 = vunpack.c.l.b16 %v447
      %v514 = vunpack.c.l.b16 %v448
      %v515 = vunpack.c.l.b16 %v449
      %v516 = vunpack.c.l.b16 %v450
      %v517 = vunpack.c.l.b16 %v451
      %v518 = vunpack.c.l.b16 %v452
      %v519 = vunpack.c.l.b16 %v453
      %v520 = vunpack.c.l.b16 %v454
      %v521 = vunpack.c.l.b16 %v455
      %v522 = vunpack.c.l.b16 %v456
      %v523 = vunpack.c.l.b16 %v457
      %v524 = vunpack.c.l.b16 %v458
      %v525 = vunpack.c.l.b16 %v459
      %v526 = vunpack.c.l.b16 %v460
      %v527 = vunpack.c.l.b16 %v461
      %v528 = vunpack.c.l.b16 %v462
      %v529 = vunpack.c.l.b16 %v463
      %v530 = vunpack.c.l.b16 %v464
      %v531 = vunpack.c.l.b16 %v465
      %v532 = vunpack.c.l.b16 %v466
      %v533 = vpack.c.b16 %v502, %v501
      %v534 = vpack.c.b16 %v504, %v503
      %v535 = vpack.c.b16 %v506, %v505
      %v536 = vpack.c.b16 %v508, %v507
      %v537 = vpack.c.b16 %v510, %v509
      %v538 = vpack.c.b16 %v512, %v511
      %v539 = vpack.c.b16 %v514, %v513
      %v540 = vpack.c.b16 %v516, %v515
      %v541 = vpack.c.b16 %v518, %v517
      %v542 = vpack.c.b16 %v520, %v519
      %v543 = vpack.c.b16 %v522, %v521
      %v544 = vpack.c.b16 %v524, %v523
      %v545 = vpack.c.b16 %v526, %v525
      %v546 = vpack.c.b16 %v528, %v527
      %v547 = vpack.c.b16 %v530, %v529
      %v548 = vpack.c.b16 %v532, %v531
      %v551 = vunpack.c.l.b16 %v467
      %v552 = vunpack.c.l.b16 %v468
      %v553 = vpack.c.b16 %v552, %v551
      %vm555 = vcmask 130048
      %v557 = vsel %vm555, %v533, 0
      %v560 = vsel %vm555, %v534, 0
      %v563 = vsel %vm555, %v535, 0
      %v566 = vsel %vm555, %v536, 0
      %v569 = vsel %vm555, %v537, 0
      %v572 = vsel %vm555, %v538, 0
      %v575 = vsel %vm555, %v539, 0
      %v578 = vsel %vm555, %v540, 0
      %v581 = vsel %vm555, %v541, 0
      %v584 = vsel %vm555, %v542, 0
      %v587 = vsel %vm555, %v543, 0
      %v590 = vsel %vm555, %v544, 0
      %v593 = vsel %vm555, %v545, 0
      %v596 = vsel %vm555, %v546, 0
      %v599 = vsel %vm555, %v547, 0
      %v602 = vsel %vm555, %v548, 0
      %604 = vmatprep.subr.bf16.mxu0 0
      %605 = vmatpush1.bf16.msra.mxu0 %v553
      %606 = vmatprep.subr.bf16.mxu0 0
      %607 = vmatpush1.bf16.msra.mxu0 0
      %608 = vmatprep.subr.bf16.mxu0 0
      %609 = vmatpush1.bf16.msra.mxu0 0
      %610 = vmatprep.subr.bf16.mxu0 0
      %611 = vmatpush1.bf16.msra.mxu0 0
      %612 = vmatprep.subr.bf16.mxu0 0
      %613 = vmatpush1.bf16.msra.mxu0 0
      %614 = vmatprep.subr.bf16.mxu0 0
      %615 = vmatpush1.bf16.msra.mxu0 0
      %616 = vmatprep.subr.bf16.mxu0 0
      %617 = vmatpush1.bf16.msra.mxu0 0
      %618 = vmatprep.subr.bf16.mxu0 0
      %619 = vmatpush1.bf16.msra.mxu0 0
      %620 = vmatprep.subr.bf16.mxu0 0
      %621 = vmatpush1.bf16.msra.mxu0 0
      %622 = vmatprep.subr.bf16.mxu0 0
      %623 = vmatpush1.bf16.msra.mxu0 0
      %624 = vmatprep.subr.bf16.mxu0 0
      %625 = vmatpush1.bf16.msra.mxu0 0
      %626 = vmatprep.subr.bf16.mxu0 0
      %627 = vmatpush1.bf16.msra.mxu0 0
      %628 = vmatprep.subr.bf16.mxu0 0
      %629 = vmatpush1.bf16.msra.mxu0 0
      %630 = vmatprep.subr.bf16.mxu0 0
      %631 = vmatpush1.bf16.msra.mxu0 0
      %632 = vmatprep.subr.bf16.mxu0 0
      %633 = vmatpush1.bf16.msra.mxu0 0
      %634 = vmatprep.subr.bf16.mxu0 0
      %635 = vmatpush1.bf16.msra.mxu0 0
      %636 = vmatprep.mubr.bf16.mxu0 0
      %637 = vmatmul.mubr.bf16.gmra.mrb[0].mxu0 %v557
      %v638 = vpop.f32.mrb[0].mxu0
      %v639 = vadd.f32 0.0, %v638
      %v640 = vpop.f32.mrb[0].mxu0
      %v641 = vpop.f32.mrb[0].mxu0
      %v642 = vadd.f32 0.0, %v641
      %v643 = vpop.f32.mrb[0].mxu0
      %644 = vmatprep.mubr.bf16.mxu0 0
      %645 = vmatmul.mubr.bf16.gmra.mrb[0].mxu0 %v560
      %v646 = vpop.f32.mrb[0].mxu0
      %v647 = vadd.f32 0.0, %v646
      %v648 = vpop.f32.mrb[0].mxu0
      %v649 = vpop.f32.mrb[0].mxu0
      %v650 = vadd.f32 0.0, %v649
      %v651 = vpop.f32.mrb[0].mxu0
      %652 = vmatprep.mubr.bf16.mxu0 0
      %653 = vmatmul.mubr.bf16.gmra.mrb[0].mxu0 %v563
      %v654 = vpop.f32.mrb[0].mxu0
      %v655 = vadd.f32 0.0, %v654
      %v656 = vpop.f32.mrb[0].mxu0
      %v657 = vpop.f32.mrb[0].mxu0
      %v658 = vadd.f32 0.0, %v657
      %v659 = vpop.f32.mrb[0].mxu0
      %660 = vmatprep.mubr.bf16.mxu0 0
      %661 = vmatmul.mubr.bf16.gmra.mrb[0].mxu0 %v566
      %v662 = vpop.f32.mrb[0].mxu0
      %v663 = vadd.f32 0.0, %v662
      %v664 = vpop.f32.mrb[0].mxu0
      %v665 = vpop.f32.mrb[0].mxu0
      %v666 = vadd.f32 0.0, %v665
      %v667 = vpop.f32.mrb[0].mxu0
      %668 = vmatprep.mubr.bf16.mxu0 0
      %669 = vmatmul.mubr.bf16.gmra.mrb[0].mxu0 %v569
      %v670 = vpop.f32.mrb[0].mxu0
      %v671 = vadd.f32 0.0, %v670
      %v672 = vpop.f32.mrb[0].mxu0
      %v673 = vpop.f32.mrb[0].mxu0
      %v674 = vadd.f32 0.0, %v673
      %v675 = vpop.f32.mrb[0].mxu0
      %676 = vmatprep.mubr.bf16.mxu0 0
      %677 = vmatmul.mubr.bf16.gmra.mrb[0].mxu0 %v572
      %v678 = vpop.f32.mrb[0].mxu0
      %v679 = vadd.f32 0.0, %v678
      %v680 = vpop.f32.mrb[0].mxu0
      %v681 = vpop.f32.mrb[0].mxu0
      %v682 = vadd.f32 0.0, %v681
      %v683 = vpop.f32.mrb[0].mxu0
      %684 = vmatprep.mubr.bf16.mxu0 0
      %685 = vmatmul.mubr.bf16.gmra.mrb[0].mxu0 %v575
      %v686 = vpop.f32.mrb[0].mxu0
      %v687 = vadd.f32 0.0, %v686
      %v688 = vpop.f32.mrb[0].mxu0
      %v689 = vpop.f32.mrb[0].mxu0
      %v690 = vadd.f32 0.0, %v689
      %v691 = vpop.f32.mrb[0].mxu0
      %692 = vmatprep.mubr.bf16.mxu0 0
      %693 = vmatmul.mubr.bf16.gmra.mrb[0].mxu0 %v578
      %v694 = vpop.f32.mrb[0].mxu0
      %v695 = vadd.f32 0.0, %v694
      %v696 = vpop.f32.mrb[0].mxu0
      %v697 = vpop.f32.mrb[0].mxu0
      %v698 = vadd.f32 0.0, %v697
      %v699 = vpop.f32.mrb[0].mxu0
      %700 = vmatprep.mubr.bf16.mxu0 0
      %701 = vmatmul.mubr.bf16.gmra.mrb[0].mxu0 %v581
      %v702 = vpop.f32.mrb[0].mxu0
      %v703 = vadd.f32 0.0, %v702
      %v704 = vpop.f32.mrb[0].mxu0
      %v705 = vpop.f32.mrb[0].mxu0
      %v706 = vadd.f32 0.0, %v705
      %v707 = vpop.f32.mrb[0].mxu0
      %708 = vmatprep.mubr.bf16.mxu0 0
      %709 = vmatmul.mubr.bf16.gmra.mrb[0].mxu0 %v584
      %v710 = vpop.f32.mrb[0].mxu0
      %v711 = vadd.f32 0.0, %v710
      %v712 = vpop.f32.mrb[0].mxu0
      %v713 = vpop.f32.mrb[0].mxu0
      %v714 = vadd.f32 0.0, %v713
      %v715 = vpop.f32.mrb[0].mxu0
      %716 = vmatprep.mubr.bf16.mxu0 0
      %717 = vmatmul.mubr.bf16.gmra.mrb[0].mxu0 %v587
      %v718 = vpop.f32.mrb[0].mxu0
      %v719 = vadd.f32 0.0, %v718
      %v720 = vpop.f32.mrb[0].mxu0
      %v721 = vpop.f32.mrb[0].mxu0
      %v722 = vadd.f32 0.0, %v721
      %v723 = vpop.f32.mrb[0].mxu0
      %724 = vmatprep.mubr.bf16.mxu0 0
      %725 = vmatmul.mubr.bf16.gmra.mrb[0].mxu0 %v590
      %v726 = vpop.f32.mrb[0].mxu0
      %v727 = vadd.f32 0.0, %v726
      %v728 = vpop.f32.mrb[0].mxu0
      %v729 = vpop.f32.mrb[0].mxu0
      %v730 = vadd.f32 0.0, %v729
      %v731 = vpop.f32.mrb[0].mxu0
      %732 = vmatprep.mubr.bf16.mxu0 0
      %733 = vmatmul.mubr.bf16.gmra.mrb[0].mxu0 %v593
      %v734 = vpop.f32.mrb[0].mxu0
      %v735 = vadd.f32 0.0, %v734
      %v736 = vpop.f32.mrb[0].mxu0
      %v737 = vpop.f32.mrb[0].mxu0
      %v738 = vadd.f32 0.0, %v737
      %v739 = vpop.f32.mrb[0].mxu0
      %740 = vmatprep.mubr.bf16.mxu0 0
      %741 = vmatmul.mubr.bf16.gmra.mrb[0].mxu0 %v596
      %v742 = vpop.f32.mrb[0].mxu0
      %v743 = vadd.f32 0.0, %v742
      %v744 = vpop.f32.mrb[0].mxu0
      %v745 = vpop.f32.mrb[0].mxu0
      %v746 = vadd.f32 0.0, %v745
      %v747 = vpop.f32.mrb[0].mxu0
      %748 = vmatprep.mubr.bf16.mxu0 0
      %749 = vmatmul.mubr.bf16.gmra.mrb[0].mxu0 %v599
      %v750 = vpop.f32.mrb[0].mxu0
      %v751 = vadd.f32 0.0, %v750
      %v752 = vpop.f32.mrb[0].mxu0
      %v753 = vpop.f32.mrb[0].mxu0
      %v754 = vadd.f32 0.0, %v753
      %v755 = vpop.f32.mrb[0].mxu0
      %756 = vmatprep.mubr.bf16.mxu0 0
      %757 = vmatmul.mubr.bf16.gmra.mrb[0].mxu0 %v602
      %v758 = vpop.f32.mrb[0].mxu0
      %v759 = vadd.f32 0.0, %v758
      %v760 = vpop.f32.mrb[0].mxu0
      %v761 = vpop.f32.mrb[0].mxu0
      %v762 = vadd.f32 0.0, %v761
      %v763 = vpop.f32.mrb[0].mxu0
      %764 = vdwg.mxu0
      %v765 = vadd.f32 %v403, %v639
      %v766 = vadd.f32 %v404, %v642
      %v767 = vadd.f32 %v405, %v647
      %v768 = vadd.f32 %v406, %v650
      %v769 = vadd.f32 %v407, %v655
      %v770 = vadd.f32 %v408, %v658
      %v771 = vadd.f32 %v409, %v663
      %v772 = vadd.f32 %v410, %v666
      %v773 = vadd.f32 %v411, %v671
      %v774 = vadd.f32 %v412, %v674
      %v775 = vadd.f32 %v413, %v679
      %v776 = vadd.f32 %v414, %v682
      %v777 = vadd.f32 %v415, %v687
      %v778 = vadd.f32 %v416, %v690
      %v779 = vadd.f32 %v417, %v695
      %v780 = vadd.f32 %v418, %v698
      %v781 = vadd.f32 %v419, %v703
      %v782 = vadd.f32 %v420, %v706
      %v783 = vadd.f32 %v421, %v711
      %v784 = vadd.f32 %v422, %v714
      %v785 = vadd.f32 %v423, %v719
      %v786 = vadd.f32 %v424, %v722
      %v787 = vadd.f32 %v425, %v727
      %v788 = vadd.f32 %v426, %v730
      %v789 = vadd.f32 %v427, %v735
      %v790 = vadd.f32 %v428, %v738
      %v791 = vadd.f32 %v429, %v743
      %v792 = vadd.f32 %v430, %v746
      %v793 = vadd.f32 %v431, %v751
      %v794 = vadd.f32 %v432, %v754
      %v795 = vadd.f32 %v433, %v759
      %v796 = vadd.f32 %v434, %v762
      %797 = vst [vmem:[#allocation2] sm:$0xff] %v765
      %798 = vst [vmem:[#allocation2 + $0x8] sm:$0xff] %v766
      %799 = vst [vmem:[#allocation2 + $0x10] sm:$0xff] %v767
      %800 = vst [vmem:[#allocation2 + $0x18] sm:$0xff] %v768
      %801 = vst [vmem:[#allocation2 + $0x20] sm:$0xff] %v769
      %802 = vst [vmem:[#allocation2 + $0x28] sm:$0xff] %v770
      %803 = vst [vmem:[#allocation2 + $0x30] sm:$0xff] %v771
      %804 = vst [vmem:[#allocation2 + $0x38] sm:$0xff] %v772
      %805 = vst [vmem:[#allocation2 + $0x40] sm:$0xff] %v773
      %806 = vst [vmem:[#allocation2 + $0x48] sm:$0xff] %v774
      %807 = vst [vmem:[#allocation2 + $0x50] sm:$0xff] %v775
      %808 = vst [vmem:[#allocation2 + $0x58] sm:$0xff] %v776
      %809 = vst [vmem:[#allocation2 + $0x60] sm:$0xff] %v777
      %810 = vst [vmem:[#allocation2 + $0x68] sm:$0xff] %v778
      %811 = vst [vmem:[#allocation2 + $0x70] sm:$0xff] %v779
      %812 = vst [vmem:[#allocation2 + $0x78] sm:$0xff] %v780
      %813 = vst [vmem:[#allocation2 + $0x80] sm:$0xff] %v781
      %814 = vst [vmem:[#allocation2 + $0x88] sm:$0xff] %v782
      %815 = vst [vmem:[#allocation2 + $0x90] sm:$0xff] %v783
      %816 = vst [vmem:[#allocation2 + $0x98] sm:$0xff] %v784
      %817 = vst [vmem:[#allocation2 + $0xa0] sm:$0xff] %v785
      %818 = vst [vmem:[#allocation2 + $0xa8] sm:$0xff] %v786
      %819 = vst [vmem:[#allocation2 + $0xb0] sm:$0xff] %v787
      %820 = vst [vmem:[#allocation2 + $0xb8] sm:$0xff] %v788
      %821 = vst [vmem:[#allocation2 + $0xc0] sm:$0xff] %v789
      %822 = vst [vmem:[#allocation2 + $0xc8] sm:$0xff] %v790
      %823 = vst [vmem:[#allocation2 + $0xd0] sm:$0xff] %v791
      %824 = vst [vmem:[#allocation2 + $0xd8] sm:$0xff] %v792
      %825 = vst [vmem:[#allocation2 + $0xe0] sm:$0xff] %v793
      %826 = vst [vmem:[#allocation2 + $0xe8] sm:$0xff] %v794
      %827 = vst [vmem:[#allocation2 + $0xf0] sm:$0xff] %v795
      %828 = vst [vmem:[#allocation2 + $0xf8] sm:$0xff] %v796
      // Predicated region
      $region45: #{block_forward.3} parent=39 // pred_check
        %p829 = pneg %p367
      $region46: #{block_forward.3} parent=39 // pred_check_branch
        %831 = sbr.rel (%p829) target = $region48
      $region47: #{block_forward.3} parent=39 // pred_region
        %v832 = vld [vmem:[#allocation2] sm:$0xff]
        %v833 = vld [vmem:[#allocation2 + $0x8] sm:$0xff]
        %v834 = vld [vmem:[#allocation2 + $0x10] sm:$0xff]
        %v835 = vld [vmem:[#allocation2 + $0x18] sm:$0xff]
        %v836 = vld [vmem:[#allocation2 + $0x20] sm:$0xff]
        %v837 = vld [vmem:[#allocation2 + $0x28] sm:$0xff]
        %v838 = vld [vmem:[#allocation2 + $0x30] sm:$0xff]
        %v839 = vld [vmem:[#allocation2 + $0x38] sm:$0xff]
        %v840 = vld [vmem:[#allocation2 + $0x40] sm:$0xff]
        %v841 = vld [vmem:[#allocation2 + $0x48] sm:$0xff]
        %v842 = vld [vmem:[#allocation2 + $0x50] sm:$0xff]
        %v843 = vld [vmem:[#allocation2 + $0x58] sm:$0xff]
        %v844 = vld [vmem:[#allocation2 + $0x60] sm:$0xff]
        %v845 = vld [vmem:[#allocation2 + $0x68] sm:$0xff]
        %v846 = vld [vmem:[#allocation2 + $0x70] sm:$0xff]
        %v847 = vld [vmem:[#allocation2 + $0x78] sm:$0xff]
        %v848 = vld [vmem:[#allocation2 + $0x80] sm:$0xff]
        %v849 = vld [vmem:[#allocation2 + $0x88] sm:$0xff]
        %v850 = vld [vmem:[#allocation2 + $0x90] sm:$0xff]
        %v851 = vld [vmem:[#allocation2 + $0x98] sm:$0xff]
        %v852 = vld [vmem:[#allocation2 + $0xa0] sm:$0xff]
        %v853 = vld [vmem:[#allocation2 + $0xa8] sm:$0xff]
        %v854 = vld [vmem:[#allocation2 + $0xb0] sm:$0xff]
        %v855 = vld [vmem:[#allocation2 + $0xb8] sm:$0xff]
        %v856 = vld [vmem:[#allocation2 + $0xc0] sm:$0xff]
        %v857 = vld [vmem:[#allocation2 + $0xc8] sm:$0xff]
        %v858 = vld [vmem:[#allocation2 + $0xd0] sm:$0xff]
        %v859 = vld [vmem:[#allocation2 + $0xd8] sm:$0xff]
        %v860 = vld [vmem:[#allocation2 + $0xe0] sm:$0xff]
        %v861 = vld [vmem:[#allocation2 + $0xe8] sm:$0xff]
        %v862 = vld [vmem:[#allocation2 + $0xf0] sm:$0xff]
        %v863 = vld [vmem:[#allocation2 + $0xf8] sm:$0xff]
        %v864 = vld [vmem:[%s343] sm:$0x1]
        %v865 = vlaneseq
        %v866 = vshrl.u32 %v865, 7
        %v867 = vsub.s32 0, %v866
        %v868 = vrot.slane %v864, %v867
        %v869 = vmul.f32 %v832, %v868
        %v870 = vmul.f32 %v833, %v868
        %v871 = vmul.f32 %v834, %v868
        %v872 = vmul.f32 %v835, %v868
        %v873 = vmul.f32 %v836, %v868
        %v874 = vmul.f32 %v837, %v868
        %v875 = vmul.f32 %v838, %v868
        %v876 = vmul.f32 %v839, %v868
        %v877 = vmul.f32 %v840, %v868
        %v878 = vmul.f32 %v841, %v868
        %v879 = vmul.f32 %v842, %v868
        %v880 = vmul.f32 %v843, %v868
        %v881 = vmul.f32 %v844, %v868
        %v882 = vmul.f32 %v845, %v868
        %v883 = vmul.f32 %v846, %v868
        %v884 = vmul.f32 %v847, %v868
        %v885 = vmul.f32 %v848, %v868
        %v886 = vmul.f32 %v849, %v868
        %v887 = vmul.f32 %v850, %v868
        %v888 = vmul.f32 %v851, %v868
        %v889 = vmul.f32 %v852, %v868
        %v890 = vmul.f32 %v853, %v868
        %v891 = vmul.f32 %v854, %v868
        %v892 = vmul.f32 %v855, %v868
        %v893 = vmul.f32 %v856, %v868
        %v894 = vmul.f32 %v857, %v868
        %v895 = vmul.f32 %v858, %v868
        %v896 = vmul.f32 %v859, %v868
        %v897 = vmul.f32 %v860, %v868
        %v898 = vmul.f32 %v861, %v868
        %v899 = vmul.f32 %v862, %v868
        %v900 = vmul.f32 %v863, %v868
        %v901 = vld [vmem:[%s347] sm:$0x1]
        %v902 = vlaneseq
        %v903 = vshrl.u32 %v902, 7
        %v904 = vsub.s32 0, %v903
        %v905 = vrot.slane %v901, %v904
        %v906 = vadd.f32 %v869, %v905
        %v907 = vadd.f32 %v870, %v905
        %v908 = vadd.f32 %v871, %v905
        %v909 = vadd.f32 %v872, %v905
        %v910 = vadd.f32 %v873, %v905
        %v911 = vadd.f32 %v874, %v905
        %v912 = vadd.f32 %v875, %v905
        %v913 = vadd.f32 %v876, %v905
        %v914 = vadd.f32 %v877, %v905
        %v915 = vadd.f32 %v878, %v905
        %v916 = vadd.f32 %v879, %v905
        %v917 = vadd.f32 %v880, %v905
        %v918 = vadd.f32 %v881, %v905
        %v919 = vadd.f32 %v882, %v905
        %v920 = vadd.f32 %v883, %v905
        %v921 = vadd.f32 %v884, %v905
        %v922 = vadd.f32 %v885, %v905
        %v923 = vadd.f32 %v886, %v905
        %v924 = vadd.f32 %v887, %v905
        %v925 = vadd.f32 %v888, %v905
        %v926 = vadd.f32 %v889, %v905
        %v927 = vadd.f32 %v890, %v905
        %v928 = vadd.f32 %v891, %v905
        %v929 = vadd.f32 %v892, %v905
        %v930 = vadd.f32 %v893, %v905
        %v931 = vadd.f32 %v894, %v905
        %v932 = vadd.f32 %v895, %v905
        %v933 = vadd.f32 %v896, %v905
        %v934 = vadd.f32 %v897, %v905
        %v935 = vadd.f32 %v898, %v905
        %v936 = vadd.f32 %v899, %v905
        %v937 = vadd.f32 %v900, %v905
        %v938 = vld [vmem:[%s355] sm:$0xff]
        %v939 = vld [vmem:[%s355 + $0x8] sm:$0xff]
        %v940 = vld [vmem:[%s355 + $0x10] sm:$0xff]
        %v941 = vld [vmem:[%s355 + $0x18] sm:$0xff]
        %v942 = vld [vmem:[%s355 + $0x20] sm:$0xff]
        %v943 = vld [vmem:[%s355 + $0x28] sm:$0xff]
        %v944 = vld [vmem:[%s355 + $0x30] sm:$0xff]
        %v945 = vld [vmem:[%s355 + $0x38] sm:$0xff]
        %v946 = vld [vmem:[%s355 + $0x40] sm:$0xff]
        %v947 = vld [vmem:[%s355 + $0x48] sm:$0xff]
        %v948 = vld [vmem:[%s355 + $0x50] sm:$0xff]
        %v949 = vld [vmem:[%s355 + $0x58] sm:$0xff]
        %v950 = vld [vmem:[%s355 + $0x60] sm:$0xff]
        %v951 = vld [vmem:[%s355 + $0x68] sm:$0xff]
        %v952 = vld [vmem:[%s355 + $0x70] sm:$0xff]
        %v953 = vld [vmem:[%s355 + $0x78] sm:$0xff]
        %v954 = vld [vmem:[%s355 + $0x80] sm:$0xff]
        %v955 = vld [vmem:[%s355 + $0x88] sm:$0xff]
        %v956 = vld [vmem:[%s355 + $0x90] sm:$0xff]
        %v957 = vld [vmem:[%s355 + $0x98] sm:$0xff]
        %v958 = vld [vmem:[%s355 + $0xa0] sm:$0xff]
        %v959 = vld [vmem:[%s355 + $0xa8] sm:$0xff]
        %v960 = vld [vmem:[%s355 + $0xb0] sm:$0xff]
        %v961 = vld [vmem:[%s355 + $0xb8] sm:$0xff]
        %v962 = vld [vmem:[%s355 + $0xc0] sm:$0xff]
        %v963 = vld [vmem:[%s355 + $0xc8] sm:$0xff]
        %v964 = vld [vmem:[%s355 + $0xd0] sm:$0xff]
        %v965 = vld [vmem:[%s355 + $0xd8] sm:$0xff]
        %v966 = vld [vmem:[%s355 + $0xe0] sm:$0xff]
        %v967 = vld [vmem:[%s355 + $0xe8] sm:$0xff]
        %v968 = vld [vmem:[%s355 + $0xf0] sm:$0xff]
        %v969 = vld [vmem:[%s355 + $0xf8] sm:$0xff]
        %v970 = vadd.f32 %v906, %v938
        %v971 = vadd.f32 %v907, %v939
        %v972 = vadd.f32 %v908, %v940
        %v973 = vadd.f32 %v909, %v941
        %v974 = vadd.f32 %v910, %v942
        %v975 = vadd.f32 %v911, %v943
        %v976 = vadd.f32 %v912, %v944
        %v977 = vadd.f32 %v913, %v945
        %v978 = vadd.f32 %v914, %v946
        %v979 = vadd.f32 %v915, %v947
        %v980 = vadd.f32 %v916, %v948
        %v981 = vadd.f32 %v917, %v949
        %v982 = vadd.f32 %v918, %v950
        %v983 = vadd.f32 %v919, %v951
        %v984 = vadd.f32 %v920, %v952
        %v985 = vadd.f32 %v921, %v953
        %v986 = vadd.f32 %v922, %v954
        %v987 = vadd.f32 %v923, %v955
        %v988 = vadd.f32 %v924, %v956
        %v989 = vadd.f32 %v925, %v957
        %v990 = vadd.f32 %v926, %v958
        %v991 = vadd.f32 %v927, %v959
        %v992 = vadd.f32 %v928, %v960
        %v993 = vadd.f32 %v929, %v961
        %v994 = vadd.f32 %v930, %v962
        %v995 = vadd.f32 %v931, %v963
        %v996 = vadd.f32 %v932, %v964
        %v997 = vadd.f32 %v933, %v965
        %v998 = vadd.f32 %v934, %v966
        %v999 = vadd.f32 %v935, %v967
        %v1000 = vadd.f32 %v936, %v968
        %v1001 = vadd.f32 %v937, %v969
        %v1002 = vmax.f32 %v970, 0.0
        %v1003 = vmax.f32 %v971, 0.0
        %v1004 = vmax.f32 %v972, 0.0
        %v1005 = vmax.f32 %v973, 0.0
        %v1006 = vmax.f32 %v974, 0.0
        %v1007 = vmax.f32 %v975, 0.0
        %v1008 = vmax.f32 %v976, 0.0
        %v1009 = vmax.f32 %v977, 0.0
        %v1010 = vmax.f32 %v978, 0.0
        %v1011 = vmax.f32 %v979, 0.0
        %v1012 = vmax.f32 %v980, 0.0
        %v1013 = vmax.f32 %v981, 0.0
        %v1014 = vmax.f32 %v982, 0.0
        %v1015 = vmax.f32 %v983, 0.0
        %v1016 = vmax.f32 %v984, 0.0
        %v1017 = vmax.f32 %v985, 0.0
        %v1018 = vmax.f32 %v986, 0.0
        %v1019 = vmax.f32 %v987, 0.0
        %v1020 = vmax.f32 %v988, 0.0
        %v1021 = vmax.f32 %v989, 0.0
        %v1022 = vmax.f32 %v990, 0.0
        %v1023 = vmax.f32 %v991, 0.0
        %v1024 = vmax.f32 %v992, 0.0
        %v1025 = vmax.f32 %v993, 0.0
        %v1026 = vmax.f32 %v994, 0.0
        %v1027 = vmax.f32 %v995, 0.0
        %v1028 = vmax.f32 %v996, 0.0
        %v1029 = vmax.f32 %v997, 0.0
        %v1030 = vmax.f32 %v998, 0.0
        %v1031 = vmax.f32 %v999, 0.0
        %v1032 = vmax.f32 %v1000, 0.0
        %v1033 = vmax.f32 %v1001, 0.0
        %1034 = vst [vmem:[%s364] sm:$0xff] %v1002
        %1035 = vst [vmem:[%s364 + $0x8] sm:$0xff] %v1003
        %1036 = vst [vmem:[%s364 + $0x10] sm:$0xff] %v1004
        %1037 = vst [vmem:[%s364 + $0x18] sm:$0xff] %v1005
        %1038 = vst [vmem:[%s364 + $0x20] sm:$0xff] %v1006
        %1039 = vst [vmem:[%s364 + $0x28] sm:$0xff] %v1007
        %1040 = vst [vmem:[%s364 + $0x30] sm:$0xff] %v1008
        %1041 = vst [vmem:[%s364 + $0x38] sm:$0xff] %v1009
        %1042 = vst [vmem:[%s364 + $0x40] sm:$0xff] %v1010
        %1043 = vst [vmem:[%s364 + $0x48] sm:$0xff] %v1011
        %1044 = vst [vmem:[%s364 + $0x50] sm:$0xff] %v1012
        %1045 = vst [vmem:[%s364 + $0x58] sm:$0xff] %v1013
        %1046 = vst [vmem:[%s364 + $0x60] sm:$0xff] %v1014
        %1047 = vst [vmem:[%s364 + $0x68] sm:$0xff] %v1015
        %1048 = vst [vmem:[%s364 + $0x70] sm:$0xff] %v1016
        %1049 = vst [vmem:[%s364 + $0x78] sm:$0xff] %v1017
        %1050 = vst [vmem:[%s364 + $0x80] sm:$0xff] %v1018
        %1051 = vst [vmem:[%s364 + $0x88] sm:$0xff] %v1019
        %1052 = vst [vmem:[%s364 + $0x90] sm:$0xff] %v1020
        %1053 = vst [vmem:[%s364 + $0x98] sm:$0xff] %v1021
        %1054 = vst [vmem:[%s364 + $0xa0] sm:$0xff] %v1022
        %1055 = vst [vmem:[%s364 + $0xa8] sm:$0xff] %v1023
        %1056 = vst [vmem:[%s364 + $0xb0] sm:$0xff] %v1024
        %1057 = vst [vmem:[%s364 + $0xb8] sm:$0xff] %v1025
        %1058 = vst [vmem:[%s364 + $0xc0] sm:$0xff] %v1026
        %1059 = vst [vmem:[%s364 + $0xc8] sm:$0xff] %v1027
        %1060 = vst [vmem:[%s364 + $0xd0] sm:$0xff] %v1028
        %1061 = vst [vmem:[%s364 + $0xd8] sm:$0xff] %v1029
        %1062 = vst [vmem:[%s364 + $0xe0] sm:$0xff] %v1030
        %1063 = vst [vmem:[%s364 + $0xe8] sm:$0xff] %v1031
        %1064 = vst [vmem:[%s364 + $0xf0] sm:$0xff] %v1032
        %1065 = vst [vmem:[%s364 + $0xf8] sm:$0xff] %v1033
      $region48: #{block_forward.3} parent=39 // pred_fallthru
        _
      %s1066 = smul.u32 32, %s21
      %p1067 = scmp.lt.s32.totalorder %s1066, 63
      %s1068 = scalar_select %p1067, %s1066, 63
      %p1069 = scmp.lt.s32.totalorder %s22, 0
      %s1070 = scalar_select %p1069, %s22, 0
      %s1071 = sadd.s32 %s1070, %s1068
      %s1072 = smul.addr %s1071, 8
      %s1073 = scalar_lea.vmem %s5, %s1072
      // Predicated region
      $region49: #{block_forward.3} parent=39 // pred_check
        %p1074 = pneg %p191
      $region50: #{block_forward.3} parent=39 // pred_check_branch
        %1076 = sbr.rel (%p1074) target = $region52
      $region51: #{block_forward.3} parent=39 // pred_region
        %s1077 = smul.u32 32, %s21
      $region52: #{block_forward.3} parent=39 // pred_fallthru
        _
    $region40: #{block_forward.3} parent=5 // pred_fallthru
      _
    %p1078 = scmp.le.s32.totalorder 2, %s11
    // Predicated region
    $region53: #{block_forward.3} parent=5 // pred_check
      %p1079 = pneg %p1078
    $region54: #{block_forward.3} parent=5 // pred_check_branch
      %1081 = sbr.rel (%p1079) target = $region56
    $region55: #{block_forward.3} parent=5 // pred_region
      %s1082 = ssub.s32 %s11, 2
      // Predicated region
      $region57: #{block_forward.3} parent=55 // pred_check
        %p1083 = pneg %p197
      $region58: #{block_forward.3} parent=55 // pred_check_branch
        %1085 = sbr.rel (%p1083) target = $region60
      $region59: #{block_forward.3} parent=55 // pred_region
        %s1086 = smul.u32 32, %s24
        %p1087 = scmp.lt.s32.totalorder %s1086, 63
        %s1088 = scalar_select %p1087, %s1086, 63
        %p1089 = scmp.lt.s32.totalorder %s25, 0
        %s1090 = scalar_select %p1089, %s25, 0
        %s1091 = sadd.s32 %s1090, %s1088
        %s1092 = smul.addr %s1091, 8
        %s1093 = scalar_lea.vmem %s5, %s1092
      $region60: #{block_forward.3} parent=55 // pred_fallthru
        _
    $region56: #{block_forward.3} parent=5 // pred_fallthru
      _
  $region6: #{block_forward.3} parent=0 // loop_footer
    %s15 = sadd.s32 1, %s11
  $region7: #{block_forward.3} parent=0 // loop_footer_branch
    %10 = sbr.rel target = $region3
  $region8: #{block_forward.3} parent=0 // loop_exit
    _

</llo_original>
